<compile_context>
chip_gen: v7x
topology: tpu7x:2x2x1
jax: 0.10.0
libtpu: 0.0.40
codegen_flags: <defaults>
</compile_context>

<pallas_src>
import functools
import math

import jax
import jax.numpy as jnp
from jax.experimental import pallas as pl
from jax.experimental.pallas import tpu as pltpu

# ------------------------------ model config ------------------------------
C_N = 32        # node channel dim
C_Z = 8         # edge channel dim
C_HIDDEN = 16   # per-head hidden dim
NO_HEADS = 4
NO_QK = 4       # qk points per head
NO_V = 8        # v points per head
INF = 1.0e8
EPS = 1.0e-6


def _pick_tile(n, k, f_tab):
  """Largest N-tile (multiple of 8 dividing N) whose working set fits a VMEM
  budget that is safe on every generation (v7x has only 64 MiB per core)."""
  budget = 40 * 2**20
  divisors = []
  for t in (256, 128, 64, 32, 16, 8):
    if n % t:
      continue
    divisors.append(t)
    work = (2 * k * t * n                 # bf16 one-hot slab
            + 4 * k * t * (f_tab + 400)   # gathered slab + rotated planes etc.
            + 4 * t * 512)                # per-tile slabs
    if work <= budget:
      return t
  if divisors:
    return divisors[-1]
  return n


# ------------------------------ Pallas kernel ------------------------------
def _edge_ipa_kernel(kvtab_ref, s_ref, e_ref, m_ref, z_ref, msk_ref,
                     wq_ref, wlg_ref, wbm_ref, wexp_ref, wo_ref, bo_ref,
                     o_ref, *, H, C, Pq, Pv, Z, K):
  """One (batch, N-tile) grid step of EdgeInvariantPointAttention."""
  P = Pq + Pv
  HC, HP, HPq, HPv, HZ = H * C, H * P, H * Pq, H * Pv, H * Z
  N = kvtab_ref.shape[0]
  TN = s_ref.shape[0]
  KT = K * TN
  V0 = HC
  PX0, PY0, PZ0, PEND = 2 * HC, 2 * HC + HP, 2 * HC + 2 * HP, 2 * HC + 3 * HP

  # ---- q-side projection (MXU), replicated across the K neighbor slots -----
  qf = jnp.dot(s_ref[...], wq_ref[...],
               preferred_element_type=jnp.float32)        # [TN, HC+3*HPq]
  qf_t = jnp.concatenate([qf] * K, axis=0)                # [K*TN, HC+3*HPq]
  q_t = qf_t[:, :HC]
  qx_t = qf_t[:, HC:HC + HPq]
  qy_t = qf_t[:, HC + HPq:HC + 2 * HPq]
  qz_t = qf_t[:, HC + 2 * HPq:]

  # ---- batched in-VMEM gather: one bf16 one-hot matmul for all K neighbors -
  e = e_ref[...]                                          # [TN, K] int32
  eb = jnp.concatenate([e[:, k:k + 1] for k in range(K)], axis=0)  # [K*TN, 1]
  lane = jax.lax.broadcasted_iota(jnp.int32, (KT, N), 1)
  sel = (lane == eb).astype(jnp.bfloat16)                 # [K*TN, N]
  g = jnp.dot(sel, kvtab_ref[...],
              preferred_element_type=jnp.float32)         # [K*TN, F_tab] f32

  # ---- fused  direction x (rel_ori @ p) == M @ p, batched over K -----------
  m = m_ref[...]                                          # [TN, K*9]
  mb = jnp.concatenate([m[:, k * 9:(k + 1) * 9] for k in range(K)], axis=0)
  px, py, pz = g[:, PX0:PY0], g[:, PY0:PZ0], g[:, PZ0:PEND]
  cx = mb[:, 0:1] * px + mb[:, 1:2] * py + mb[:, 2:3] * pz  # [K*TN, HP]
  cy = mb[:, 3:4] * px + mb[:, 4:5] * py + mb[:, 5:6] * pz
  cz = mb[:, 6:7] * px + mb[:, 7:8] * py + mb[:, 8:9] * pz

  # ---- attention logits: per-head sums done as one MXU matmul --------------
  prod = q_t * g[:, :HC]                                  # [K*TN, HC]
  ddx = qx_t - cx[:, :HPq]
  ddy = qy_t - cy[:, :HPq]
  ddz = qz_t - cz[:, :HPq]
  d2 = ddx * ddx + ddy * ddy + ddz * ddz                  # [K*TN, HPq]
  pd = jnp.concatenate([prod, d2], axis=1)                # [K*TN, HC+HPq]
  qkpt = jnp.dot(pd, wlg_ref[...],
                 preferred_element_type=jnp.float32)      # [K*TN, H]

  # pair bias + mask, directly in the lane-dense [TN, K*H] logit layout
  maskterm = INF * (msk_ref[...] - 1.0)                   # [TN, K]
  zm = jnp.concatenate([z_ref[...], maskterm], axis=1)    # [TN, K*Z + K]
  bmask = jnp.dot(zm, wbm_ref[...],
                  preferred_element_type=jnp.float32)     # [TN, K*H]
  logits = jnp.concatenate(
      [qkpt[k * TN:(k + 1) * TN, :] for k in range(K)], axis=1) + bmask

  # ---- softmax over the K neighbors (k-major lanes), divide on the EUP -----
  mx = logits[:, :H]
  for k in range(1, K):
    mx = jnp.maximum(mx, logits[:, k * H:(k + 1) * H])
  es = jnp.exp(logits - jnp.concatenate([mx] * K, axis=1))
  den = es[:, :H]
  for k in range(1, K):
    den = den + es[:, k * H:(k + 1) * H]
  inv = pl.reciprocal(den, approx=True)                   # [TN, H]
  attn = es * jnp.concatenate([inv] * K, axis=1)          # [TN, K*H]

  # ---- attention-weighted reductions: full-slab FMAs per neighbor ----------
  z_all = z_ref[...]                                      # [TN, K*Z]
  o_acc = ox_acc = oy_acc = oz_acc = op_acc = None
  for k in range(K):
    r0, r1 = k * TN, (k + 1) * TN
    aexp = jnp.dot(attn[:, k * H:(k + 1) * H], wexp_ref[...],
                   preferred_element_type=jnp.float32)    # [TN, HC+HPv+HZ]
    aC = aexp[:, :HC]
    aPv = aexp[:, HC:HC + HPv]
    aZ = aexp[:, HC + HPv:]
    zt = jnp.concatenate([z_all[:, k * Z:(k + 1) * Z]] * H, axis=1)  # [TN, HZ]
    t_o = aC * g[r0:r1, V0:V0 + HC]
    t_x = aPv * cx[r0:r1, HPq:]
    t_y = aPv * cy[r0:r1, HPq:]
    t_z = aPv * cz[r0:r1, HPq:]
    t_p = aZ * zt
    if k == 0:
      o_acc, ox_acc, oy_acc, oz_acc, op_acc = t_o, t_x, t_y, t_z, t_p
    else:
      o_acc = o_acc + t_o
      ox_acc = ox_acc + t_x
      oy_acc = oy_acc + t_y
      oz_acc = oz_acc + t_z
      op_acc = op_acc + t_p
  onorm = jnp.sqrt(ox_acc * ox_acc + oy_acc * oy_acc + oz_acc * oz_acc + EPS)

  # ---- fused concat + linear_out: only the dense [TN, c_n] tile hits HBM ---
  # torch.cat order: [o | o_pt_x | o_pt_y | o_pt_z | o_pt_norm | o_pair]
  feat = jnp.concatenate([o_acc, ox_acc, oy_acc, oz_acc, onorm, op_acc], axis=1)
  o_ref[...] = (jnp.dot(feat, wo_ref[...],
                        preferred_element_type=jnp.float32) + bo_ref[...])


# ----------------------------------- glue -----------------------------------
def init_params(key):
  h, c, pq, pv = NO_HEADS, C_HIDDEN, NO_QK, NO_V
  p = pq + pv
  d_cat = h * (c + 4 * pv + C_Z)
  ks = jax.random.split(key, 7)

  def lin(k, fan_in, fan_out):
    return jax.random.normal(k, (fan_in, fan_out), jnp.float32) / math.sqrt(fan_in)

  return {
      "w_q": lin(ks[0], C_N, h * c),
      "w_kv": lin(ks[1], C_N, 2 * h * c),
      "w_q_pts": lin(ks[2], C_N, h * pq * 3),
      "w_kv_pts": lin(ks[3], C_N, h * p * 3),
      "w_b": lin(ks[4], C_Z, h),
      "w_out": lin(ks[5], d_cat, C_N),
      "b_out": 0.01 * jax.random.normal(ks[6], (C_N,), jnp.float32),
      # ipa_point_weights_init_: softplus^{-1}(1.0)
      "head_weights": jnp.full((h,), math.log(math.e - 1.0), jnp.float32),
  }


def edge_ipa_forward(params, s, z_e, direction, rel_ori, pair_mask, E_idx):
  """Pallas forward (the torch `r: Rigid` arg is unused in the reference)."""
  B, N, cn = s.shape
  K = E_idx.shape[-1]
  H, C, Pq, Pv, Z = NO_HEADS, C_HIDDEN, NO_QK, NO_V, C_Z
  P = Pq + Pv
  HC, HP, HPq, HPv, HZ = H * C, H * P, H * Pq, H * Pv, H * Z
  D_cat = H * (C + 4 * Pv + Z)
  F_tab = 2 * HC + 3 * HP
  TN = _pick_tile(N, K, F_tab)

  qk_scale = math.sqrt(1.0 / (3.0 * C))
  b_scale = math.sqrt(1.0 / 3.0)

  # ---- fold the cross product into the rotation:  d x (R p) = (skew(d) R) p
  R = rel_ori
  dx, dy, dz = direction[..., 0], direction[..., 1], direction[..., 2]
  M = jnp.stack([
      dy * R[..., 2, 0] - dz * R[..., 1, 0],
      dy * R[..., 2, 1] - dz * R[..., 1, 1],
      dy * R[..., 2, 2] - dz * R[..., 1, 2],
      dz * R[..., 0, 0] - dx * R[..., 2, 0],
      dz * R[..., 0, 1] - dx * R[..., 2, 1],
      dz * R[..., 0, 2] - dx * R[..., 2, 2],
      dx * R[..., 1, 0] - dy * R[..., 0, 0],
      dx * R[..., 1, 1] - dy * R[..., 0, 1],
      dx * R[..., 1, 2] - dy * R[..., 0, 2],
  ], axis=-1).reshape(B, N, K * 9)

  z_flat = z_e.reshape(B, N, K * Z)
  e_idx = E_idx.astype(jnp.int32)
  mask = pair_mask.astype(jnp.float32)

  # ---- one-time weight repacking into the kernel's lane-dense layouts ------
  k_cols = jnp.asarray([h * 2 * C + c for h in range(H) for c in range(C)])
  v_cols = jnp.asarray([h * 2 * C + C + c for h in range(H) for c in range(C)])
  plane = ([h * P + pp for h in range(H) for pp in range(Pq)] +
           [h * P + Pq + pp for h in range(H) for pp in range(Pv)])
  pts_cols = jnp.asarray([cc * HP + j for cc in range(3) for j in plane])
  w_kvtab = jnp.concatenate([params["w_kv"][:, k_cols],
                             params["w_kv"][:, v_cols],
                             params["w_kv_pts"][:, pts_cols]], axis=1)
  # hoisted kv table: computed once per call, streamed in bf16 (half DMA).
  kv_tab = jnp.dot(s, w_kvtab).astype(jnp.bfloat16)                # [B,N,F_tab]

  w_qside = jnp.concatenate([params["w_q"], params["w_q_pts"]], axis=1)

  hw_eff = (jax.nn.softplus(params["head_weights"])
            * math.sqrt(1.0 / (3.0 * (Pq * 9.0 / 2.0))) * (-0.5))   # [H]
  eyeH = jnp.eye(H, dtype=jnp.float32)
  eyeK = jnp.eye(K, dtype=jnp.float32)
  # per-head sum matrix: [prod|d2] @ w_logit -> qk + pt logits, scales folded in
  w_logit = jnp.concatenate([
      jnp.kron(eyeH, jnp.ones((C, 1), jnp.float32)) * qk_scale,
      jnp.kron(eyeH, jnp.ones((Pq, 1), jnp.float32)) * hw_eff[None, :],
  ], axis=0)                                                        # [HC+HPq, H]
  # block-diag pair-bias + mask matrix: [z|maskterm] @ w_bm -> [TN, K*H]
  w_bm = jnp.concatenate([
      jnp.kron(eyeK, params["w_b"]) * b_scale,
      jnp.kron(eyeK, jnp.ones((1, H), jnp.float32)),
  ], axis=0)                                                        # [K*Z+K, K*H]
  # attention expansion matrix: attn_k [TN,H] @ w_exp -> [TN, HC|HPv|HZ]
  w_exp = jnp.concatenate([
      jnp.kron(eyeH, jnp.ones((1, C), jnp.float32)),
      jnp.kron(eyeH, jnp.ones((1, Pv), jnp.float32)),
      jnp.kron(eyeH, jnp.ones((1, Z), jnp.float32)),
  ], axis=1)                                                        # [H, HC+HPv+HZ]
  b_out = params["b_out"].reshape(1, cn)

  # scoped-VMEM request sized to the working set (v7x has only 64 MiB/TC)
  work = (2 * 2 * N * F_tab                       # kv_tab block, double-buffered
          + 2 * K * TN * N                        # bf16 one-hot slab
          + 4 * K * TN * (F_tab + 3 * HP + 2 * HC + 4 * HPq)
          + 4 * TN * (D_cat + 4 * cn + 4 * K * H))
  vmem_limit = int(min(48 * 2**20, max(16 * 2**20, 2 * work)))

  kernel = functools.partial(_edge_ipa_kernel, H=H, C=C, Pq=Pq, Pv=Pv, Z=Z, K=K)
  out = pl.pallas_call(
      kernel,
      grid=(B, N // TN),
      in_specs=[
          pl.BlockSpec((None, N, F_tab), lambda b, i: (b, 0, 0)),    # kv table
          pl.BlockSpec((None, TN, cn), lambda b, i: (b, i, 0)),      # s tile
          pl.BlockSpec((None, TN, K), lambda b, i: (b, i, 0)),       # E_idx
          pl.BlockSpec((None, TN, K * 9), lambda b, i: (b, i, 0)),   # M=skew(d)R
          pl.BlockSpec((None, TN, K * Z), lambda b, i: (b, i, 0)),   # z_e
          pl.BlockSpec((None, TN, K), lambda b, i: (b, i, 0)),       # pair_mask
          pl.BlockSpec((cn, HC + 3 * HPq), lambda b, i: (0, 0)),     # Wq|Wq_pts
          pl.BlockSpec((HC + HPq, H), lambda b, i: (0, 0)),          # W_logit
          pl.BlockSpec((K * Z + K, K * H), lambda b, i: (0, 0)),     # W_b blkdiag
          pl.BlockSpec((H, HC + HPv + HZ), lambda b, i: (0, 0)),     # attn expand
          pl.BlockSpec((D_cat, cn), lambda b, i: (0, 0)),            # W_out
          pl.BlockSpec((1, cn), lambda b, i: (0, 0)),                # b_out
      ],
      out_specs=pl.BlockSpec((None, TN, cn), lambda b, i: (b, i, 0)),
      out_shape=jax.ShapeDtypeStruct((B, N, cn), jnp.float32),
      compiler_params=pltpu.CompilerParams(
          dimension_semantics=("parallel", "parallel"),
          vmem_limit_bytes=vmem_limit),
  )(kv_tab, s, e_idx, M, z_flat, mask, w_qside, w_logit, w_bm, w_exp,
    params["w_out"], b_out)
  return out


# -------------------------- pure-JAX reference check ------------------------
def _gather_node(nodes, neighbor_idx):
  b = nodes.shape[0]
  flat = neighbor_idx.reshape(b, -1)
  g = jax.vmap(lambda nd, ix: nd[ix])(nodes, flat)
  return g.reshape(neighbor_idx.shape[:3] + nodes.shape[2:])


def edge_ipa_reference(params, s, z_e, direction, rel_ori, pair_mask, E_idx):
  B, N, _ = s.shape
  H, C, Pq, Pv, Z = NO_HEADS, C_HIDDEN, NO_QK, NO_V, C_Z
  P = Pq + Pv
  hp = "highest"

  q = jnp.dot(s, params["w_q"], precision=hp).reshape(B, N, H, C)
  kv = jnp.dot(s, params["w_kv"], precision=hp).reshape(B, N, H, 2 * C)
  qp = jnp.dot(s, params["w_q_pts"], precision=hp).reshape(B, N, 3, H * Pq)
  q_pts = jnp.moveaxis(qp, 2, -1).reshape(B, N, H, Pq, 3)
  kvp = jnp.dot(s, params["w_kv_pts"], precision=hp).reshape(B, N, 3, H * P)
  kv_pts = jnp.moveaxis(kvp, 2, -1).reshape(B, N, H, P, 3)

  kv_e = _gather_node(kv, E_idx)
  k_e, v_e = kv_e[..., :C], kv_e[..., C:]
  kv_pts_e = _gather_node(kv_pts, E_idx)

  rot = jnp.einsum("bnkij,bnkhpj->bnkhpi", rel_ori, kv_pts_e, precision=hp)
  crossed = jnp.cross(direction[:, :, :, None, None, :], rot)
  k_pts_e, v_pts_e = crossed[..., :Pq, :], crossed[..., Pq:, :]

  qk = jnp.einsum("bnhc,bnkhc->bnkh", q, k_e, precision=hp)
  qk = qk * math.sqrt(1.0 / (3.0 * C))
  b_lin = jnp.einsum("bnkz,zh->bnkh", z_e, params["w_b"], precision=hp)
  b_lin = b_lin * math.sqrt(1.0 / 3.0)

  d2 = jnp.sum((q_pts[:, :, None] - k_pts_e) ** 2, axis=-1)     # [B,N,K,H,Pq]
  hw = (jax.nn.softplus(params["head_weights"])
        * math.sqrt(1.0 / (3.0 * (Pq * 9.0 / 2.0))))
  pt = jnp.sum(d2 * hw[None, None, None, :, None], axis=-1) * (-0.5)

  sq_mask = INF * (pair_mask - 1.0)
  logits = qk + b_lin + pt + sq_mask[..., None]                 # [B,N,K,H]
  a = jax.nn.softmax(logits, axis=2)

  o = jnp.einsum("bnkh,bnkhc->bnhc", a, v_e, precision=hp).reshape(B, N, H * C)
  o_pt = jnp.einsum("bnkh,bnkhpx->bnhpx", a, v_pts_e, precision=hp)
  o_pt_norm = jnp.sqrt(jnp.sum(o_pt ** 2, axis=-1) + EPS).reshape(B, N, H * Pv)
  o_pair = jnp.einsum("bnkh,bnkz->bnhz", a, z_e, precision=hp).reshape(B, N, H * Z)

  feat = jnp.concatenate([
      o,
      o_pt[..., 0].reshape(B, N, H * Pv),
      o_pt[..., 1].reshape(B, N, H * Pv),
      o_pt[..., 2].reshape(B, N, H * Pv),
      o_pt_norm,
      o_pair,
  ], axis=-1)
  return jnp.dot(feat, params["w_out"], precision=hp) + params["b_out"]


# ----------------------------------- main -----------------------------------
if __name__ == "__main__":
  key = jax.random.PRNGKey(0)
  B, N, K = 2, 8, 4
  kk = jax.random.split(key, 7)
  s = jax.random.normal(kk[0], (B, N, C_N), jnp.float32)
  z_e = jax.random.normal(kk[1], (B, N, K, C_Z), jnp.float32)
  direction = jax.random.normal(kk[2], (B, N, K, 3), jnp.float32)
  rel_ori = jax.random.normal(kk[3], (B, N, K, 3, 3), jnp.float32)
  pair_mask = (jax.random.uniform(kk[4], (B, N, K)) > 0.2).astype(jnp.float32)
  E_idx = jax.random.randint(kk[5], (B, N, K), 0, N, dtype=jnp.int32)
  params = init_params(kk[6])

  out = edge_ipa_forward(params, s, z_e, direction, rel_ori, pair_mask, E_idx)
  out = jax.block_until_ready(out)

  ref = edge_ipa_reference(params, s, z_e, direction, rel_ori, pair_mask, E_idx)
  assert out.shape == (B, N, C_N)
  assert bool(jnp.all(jnp.isfinite(out)))
  # loose tolerance: bf16 gather table + approx EUP reciprocal + default MXU
  # precision vs a precision="highest" f32 reference
  max_err = float(jnp.max(jnp.abs(out - ref)))
  assert max_err < 3.0e-1, f"max abs err too large: {max_err}"
  print("KERNEL_OK")
</pallas_src>

<mosaic_0001>
module attributes {stable_mosaic.version = 11 : i64} {
  func.func @_edge_ipa_kernel(%arg0: i32, %arg1: i32, %arg2: memref<1x8x272xbf16, #tpu.memory_space<vmem>>, %arg3: memref<1x8x32xf32, #tpu.memory_space<vmem>>, %arg4: memref<1x8x4xi32, #tpu.memory_space<vmem>>, %arg5: memref<1x8x36xf32, #tpu.memory_space<vmem>>, %arg6: memref<1x8x32xf32, #tpu.memory_space<vmem>>, %arg7: memref<1x8x4xf32, #tpu.memory_space<vmem>>, %arg8: memref<32x112xf32, #tpu.memory_space<vmem>>, %arg9: memref<80x4xf32, #tpu.memory_space<vmem>>, %arg10: memref<36x16xf32, #tpu.memory_space<vmem>>, %arg11: memref<4x128xf32, #tpu.memory_space<vmem>>, %arg12: memref<224x32xf32, #tpu.memory_space<vmem>>, %arg13: memref<1x32xf32, #tpu.memory_space<vmem>>, %arg14: memref<1x8x32xf32, #tpu.memory_space<vmem>>) attributes {dimension_semantics = [#tpu.dimension_semantics<parallel>, #tpu.dimension_semantics<parallel>], iteration_bounds = array<i64: 2, 1>, scalar_prefetch = 0 : i64, scratch_operands = 0 : i64, tpu.core_type = #tpu.core_type<tc>, window_params = [{transform_indices = @transform_0, window_bounds = array<i64: 1, 8, 272>}, {transform_indices = @transform_1, window_bounds = array<i64: 1, 8, 32>}, {transform_indices = @transform_2, window_bounds = array<i64: 1, 8, 4>}, {transform_indices = @transform_3, window_bounds = array<i64: 1, 8, 36>}, {transform_indices = @transform_4, window_bounds = array<i64: 1, 8, 32>}, {transform_indices = @transform_5, window_bounds = array<i64: 1, 8, 4>}, {pipeline_mode = #tpu.pipeline_mode<synchronous>, transform_indices = @transform_6, window_bounds = array<i64: 32, 112>}, {pipeline_mode = #tpu.pipeline_mode<synchronous>, transform_indices = @transform_7, window_bounds = array<i64: 80, 4>}, {pipeline_mode = #tpu.pipeline_mode<synchronous>, transform_indices = @transform_8, window_bounds = array<i64: 36, 16>}, {pipeline_mode = #tpu.pipeline_mode<synchronous>, transform_indices = @transform_9, window_bounds = array<i64: 4, 128>}, {pipeline_mode = #tpu.pipeline_mode<synchronous>, transform_indices = @transform_10, window_bounds = array<i64: 224, 32>}, {pipeline_mode = #tpu.pipeline_mode<synchronous>, transform_indices = @transform_11, window_bounds = array<i64: 1, 32>}, {transform_indices = @transform_12, window_bounds = array<i64: 1, 8, 32>}]} {
    %c0 = arith.constant 0 : index
    %c0_0 = arith.constant 0 : index
    %c0_1 = arith.constant 0 : index
    %0 = vector.load %arg3[%c0, %c0_0, %c0_1] : memref<1x8x32xf32, #tpu.memory_space<vmem>>, vector<1x8x32xf32>
    %1 = vector.shape_cast %0 : vector<1x8x32xf32> to vector<8x32xf32>
    %c0_2 = arith.constant 0 : index
    %c0_3 = arith.constant 0 : index
    %2 = vector.load %arg8[%c0_2, %c0_3] : memref<32x112xf32, #tpu.memory_space<vmem>>, vector<32x112xf32>
    %cst = arith.constant dense<0.000000e+00> : vector<8x112xf32>
    %3 = tpu.matmul %1, %2, %cst {dimension_numbers = #tpu.dot_dimension_numbers<[1], [0], [0], [1], [0, 0, 1, 1], [], []>} : vector<8x32xf32>, vector<32x112xf32>, vector<8x112xf32> -> vector<8x112xf32>
    %4 = tpu.concatenate %3, %3, %3, %3 in 0 : vector<8x112xf32>, vector<8x112xf32>, vector<8x112xf32>, vector<8x112xf32> -> vector<32x112xf32>
    %5 = vector.extract_strided_slice %4 {offsets = [0, 0], sizes = [32, 64], strides = [1, 1]} : vector<32x112xf32> to vector<32x64xf32>
    %6 = vector.extract_strided_slice %4 {offsets = [0, 64], sizes = [32, 16], strides = [1, 1]} : vector<32x112xf32> to vector<32x16xf32>
    %7 = vector.extract_strided_slice %4 {offsets = [0, 80], sizes = [32, 16], strides = [1, 1]} : vector<32x112xf32> to vector<32x16xf32>
    %8 = vector.extract_strided_slice %4 {offsets = [0, 96], sizes = [32, 16], strides = [1, 1]} : vector<32x112xf32> to vector<32x16xf32>
    %c0_4 = arith.constant 0 : index
    %c0_5 = arith.constant 0 : index
    %c0_6 = arith.constant 0 : index
    %9 = vector.load %arg4[%c0_4, %c0_5, %c0_6] : memref<1x8x4xi32, #tpu.memory_space<vmem>>, vector<1x8x4xi32>
    %10 = vector.shape_cast %9 : vector<1x8x4xi32> to vector<8x4xi32>
    %11 = vector.extract_strided_slice %10 {offsets = [0, 0], sizes = [8, 1], strides = [1, 1]} : vector<8x4xi32> to vector<8x1xi32>
    %12 = vector.extract_strided_slice %10 {offsets = [0, 1], sizes = [8, 1], strides = [1, 1]} : vector<8x4xi32> to vector<8x1xi32>
    %13 = vector.extract_strided_slice %10 {offsets = [0, 2], sizes = [8, 1], strides = [1, 1]} : vector<8x4xi32> to vector<8x1xi32>
    %14 = vector.extract_strided_slice %10 {offsets = [0, 3], sizes = [8, 1], strides = [1, 1]} : vector<8x4xi32> to vector<8x1xi32>
    %15 = tpu.concatenate %11, %12, %13, %14 in 0 : vector<8x1xi32>, vector<8x1xi32>, vector<8x1xi32>, vector<8x1xi32> -> vector<32x1xi32>
    %16 = tpu.iota {dimensions = array<i32: 1>} : vector<32x8xi32>
    %17 = vector.broadcast %15 : vector<32x1xi32> to vector<32x8xi32>
    %18 = arith.cmpi eq, %16, %17 : vector<32x8xi32>
    %19 = arith.extui %18 : vector<32x8xi1> to vector<32x8xi32>
    %20 = arith.sitofp %19 : vector<32x8xi32> to vector<32x8xf32>
    %21 = arith.truncf %20 : vector<32x8xf32> to vector<32x8xbf16>
    %c0_7 = arith.constant 0 : index
    %c0_8 = arith.constant 0 : index
    %c0_9 = arith.constant 0 : index
    %22 = vector.load %arg2[%c0_7, %c0_8, %c0_9] : memref<1x8x272xbf16, #tpu.memory_space<vmem>>, vector<1x8x272xbf16>
    %23 = vector.shape_cast %22 : vector<1x8x272xbf16> to vector<8x272xbf16>
    %cst_10 = arith.constant dense<0.000000e+00> : vector<32x272xf32>
    %24 = tpu.matmul %21, %23, %cst_10 {dimension_numbers = #tpu.dot_dimension_numbers<[1], [0], [0], [1], [0, 0, 1, 1], [], []>} : vector<32x8xbf16>, vector<8x272xbf16>, vector<32x272xf32> -> vector<32x272xf32>
    %c0_11 = arith.constant 0 : index
    %c0_12 = arith.constant 0 : index
    %c0_13 = arith.constant 0 : index
    %25 = vector.load %arg5[%c0_11, %c0_12, %c0_13] : memref<1x8x36xf32, #tpu.memory_space<vmem>>, vector<1x8x36xf32>
    %26 = vector.shape_cast %25 : vector<1x8x36xf32> to vector<8x36xf32>
    %27 = vector.extract_strided_slice %26 {offsets = [0, 0], sizes = [8, 9], strides = [1, 1]} : vector<8x36xf32> to vector<8x9xf32>
    %28 = vector.extract_strided_slice %26 {offsets = [0, 9], sizes = [8, 9], strides = [1, 1]} : vector<8x36xf32> to vector<8x9xf32>
    %29 = vector.extract_strided_slice %26 {offsets = [0, 18], sizes = [8, 9], strides = [1, 1]} : vector<8x36xf32> to vector<8x9xf32>
    %30 = vector.extract_strided_slice %26 {offsets = [0, 27], sizes = [8, 9], strides = [1, 1]} : vector<8x36xf32> to vector<8x9xf32>
    %31 = tpu.concatenate %27, %28, %29, %30 in 0 : vector<8x9xf32>, vector<8x9xf32>, vector<8x9xf32>, vector<8x9xf32> -> vector<32x9xf32>
    %32 = vector.extract_strided_slice %24 {offsets = [0, 128], sizes = [32, 48], strides = [1, 1]} : vector<32x272xf32> to vector<32x48xf32>
    %33 = vector.extract_strided_slice %24 {offsets = [0, 176], sizes = [32, 48], strides = [1, 1]} : vector<32x272xf32> to vector<32x48xf32>
    %34 = vector.extract_strided_slice %24 {offsets = [0, 224], sizes = [32, 48], strides = [1, 1]} : vector<32x272xf32> to vector<32x48xf32>
    %35 = vector.extract_strided_slice %31 {offsets = [0, 0], sizes = [32, 1], strides = [1, 1]} : vector<32x9xf32> to vector<32x1xf32>
    %36 = vector.broadcast %35 : vector<32x1xf32> to vector<32x48xf32>
    %37 = arith.mulf %36, %32 : vector<32x48xf32>
    %38 = vector.extract_strided_slice %31 {offsets = [0, 1], sizes = [32, 1], strides = [1, 1]} : vector<32x9xf32> to vector<32x1xf32>
    %39 = vector.broadcast %38 : vector<32x1xf32> to vector<32x48xf32>
    %40 = arith.mulf %39, %33 : vector<32x48xf32>
    %41 = arith.addf %37, %40 : vector<32x48xf32>
    %42 = vector.extract_strided_slice %31 {offsets = [0, 2], sizes = [32, 1], strides = [1, 1]} : vector<32x9xf32> to vector<32x1xf32>
    %43 = vector.broadcast %42 : vector<32x1xf32> to vector<32x48xf32>
    %44 = arith.mulf %43, %34 : vector<32x48xf32>
    %45 = arith.addf %41, %44 : vector<32x48xf32>
    %46 = vector.extract_strided_slice %31 {offsets = [0, 3], sizes = [32, 1], strides = [1, 1]} : vector<32x9xf32> to vector<32x1xf32>
    %47 = vector.broadcast %46 : vector<32x1xf32> to vector<32x48xf32>
    %48 = arith.mulf %47, %32 : vector<32x48xf32>
    %49 = vector.extract_strided_slice %31 {offsets = [0, 4], sizes = [32, 1], strides = [1, 1]} : vector<32x9xf32> to vector<32x1xf32>
    %50 = vector.broadcast %49 : vector<32x1xf32> to vector<32x48xf32>
    %51 = arith.mulf %50, %33 : vector<32x48xf32>
    %52 = arith.addf %48, %51 : vector<32x48xf32>
    %53 = vector.extract_strided_slice %31 {offsets = [0, 5], sizes = [32, 1], strides = [1, 1]} : vector<32x9xf32> to vector<32x1xf32>
    %54 = vector.broadcast %53 : vector<32x1xf32> to vector<32x48xf32>
    %55 = arith.mulf %54, %34 : vector<32x48xf32>
    %56 = arith.addf %52, %55 : vector<32x48xf32>
    %57 = vector.extract_strided_slice %31 {offsets = [0, 6], sizes = [32, 1], strides = [1, 1]} : vector<32x9xf32> to vector<32x1xf32>
    %58 = vector.broadcast %57 : vector<32x1xf32> to vector<32x48xf32>
    %59 = arith.mulf %58, %32 : vector<32x48xf32>
    %60 = vector.extract_strided_slice %31 {offsets = [0, 7], sizes = [32, 1], strides = [1, 1]} : vector<32x9xf32> to vector<32x1xf32>
    %61 = vector.broadcast %60 : vector<32x1xf32> to vector<32x48xf32>
    %62 = arith.mulf %61, %33 : vector<32x48xf32>
    %63 = arith.addf %59, %62 : vector<32x48xf32>
    %64 = vector.extract_strided_slice %31 {offsets = [0, 8], sizes = [32, 1], strides = [1, 1]} : vector<32x9xf32> to vector<32x1xf32>
    %65 = vector.broadcast %64 : vector<32x1xf32> to vector<32x48xf32>
    %66 = arith.mulf %65, %34 : vector<32x48xf32>
    %67 = arith.addf %63, %66 : vector<32x48xf32>
    %68 = vector.extract_strided_slice %24 {offsets = [0, 0], sizes = [32, 64], strides = [1, 1]} : vector<32x272xf32> to vector<32x64xf32>
    %69 = arith.mulf %5, %68 : vector<32x64xf32>
    %70 = vector.extract_strided_slice %45 {offsets = [0, 0], sizes = [32, 16], strides = [1, 1]} : vector<32x48xf32> to vector<32x16xf32>
    %71 = arith.subf %6, %70 : vector<32x16xf32>
    %72 = vector.extract_strided_slice %56 {offsets = [0, 0], sizes = [32, 16], strides = [1, 1]} : vector<32x48xf32> to vector<32x16xf32>
    %73 = arith.subf %7, %72 : vector<32x16xf32>
    %74 = vector.extract_strided_slice %67 {offsets = [0, 0], sizes = [32, 16], strides = [1, 1]} : vector<32x48xf32> to vector<32x16xf32>
    %75 = arith.subf %8, %74 : vector<32x16xf32>
    %76 = arith.mulf %71, %71 : vector<32x16xf32>
    %77 = arith.mulf %73, %73 : vector<32x16xf32>
    %78 = arith.addf %76, %77 : vector<32x16xf32>
    %79 = arith.mulf %75, %75 : vector<32x16xf32>
    %80 = arith.addf %78, %79 : vector<32x16xf32>
    %81 = tpu.concatenate %69, %80 in 1 : vector<32x64xf32>, vector<32x16xf32> -> vector<32x80xf32>
    %c0_14 = arith.constant 0 : index
    %c0_15 = arith.constant 0 : index
    %82 = vector.load %arg9[%c0_14, %c0_15] : memref<80x4xf32, #tpu.memory_space<vmem>>, vector<80x4xf32>
    %cst_16 = arith.constant dense<0.000000e+00> : vector<32x4xf32>
    %83 = tpu.matmul %81, %82, %cst_16 {dimension_numbers = #tpu.dot_dimension_numbers<[1], [0], [0], [1], [0, 0, 1, 1], [], []>} : vector<32x80xf32>, vector<80x4xf32>, vector<32x4xf32> -> vector<32x4xf32>
    %c0_17 = arith.constant 0 : index
    %c0_18 = arith.constant 0 : index
    %c0_19 = arith.constant 0 : index
    %84 = vector.load %arg7[%c0_17, %c0_18, %c0_19] : memref<1x8x4xf32, #tpu.memory_space<vmem>>, vector<1x8x4xf32>
    %85 = vector.shape_cast %84 : vector<1x8x4xf32> to vector<8x4xf32>
    %cst_20 = arith.constant 1.000000e+00 : f32
    %86 = vector.broadcast %cst_20 : f32 to vector<8x4xf32>
    %87 = arith.subf %85, %86 : vector<8x4xf32>
    %cst_21 = arith.constant 1.000000e+08 : f32
    %88 = vector.broadcast %cst_21 : f32 to vector<8x4xf32>
    %89 = arith.mulf %88, %87 : vector<8x4xf32>
    %c0_22 = arith.constant 0 : index
    %c0_23 = arith.constant 0 : index
    %c0_24 = arith.constant 0 : index
    %90 = vector.load %arg6[%c0_22, %c0_23, %c0_24] : memref<1x8x32xf32, #tpu.memory_space<vmem>>, vector<1x8x32xf32>
    %91 = vector.shape_cast %90 : vector<1x8x32xf32> to vector<8x32xf32>
    %92 = tpu.concatenate %91, %89 in 1 : vector<8x32xf32>, vector<8x4xf32> -> vector<8x36xf32>
    %c0_25 = arith.constant 0 : index
    %c0_26 = arith.constant 0 : index
    %93 = vector.load %arg10[%c0_25, %c0_26] : memref<36x16xf32, #tpu.memory_space<vmem>>, vector<36x16xf32>
    %cst_27 = arith.constant dense<0.000000e+00> : vector<8x16xf32>
    %94 = tpu.matmul %92, %93, %cst_27 {dimension_numbers = #tpu.dot_dimension_numbers<[1], [0], [0], [1], [0, 0, 1, 1], [], []>} : vector<8x36xf32>, vector<36x16xf32>, vector<8x16xf32> -> vector<8x16xf32>
    %95 = vector.extract_strided_slice %83 {offsets = [0, 0], sizes = [8, 4], strides = [1, 1]} : vector<32x4xf32> to vector<8x4xf32>
    %96 = vector.extract_strided_slice %83 {offsets = [8, 0], sizes = [8, 4], strides = [1, 1]} : vector<32x4xf32> to vector<8x4xf32>
    %97 = vector.extract_strided_slice %83 {offsets = [16, 0], sizes = [8, 4], strides = [1, 1]} : vector<32x4xf32> to vector<8x4xf32>
    %98 = vector.extract_strided_slice %83 {offsets = [24, 0], sizes = [8, 4], strides = [1, 1]} : vector<32x4xf32> to vector<8x4xf32>
    %99 = tpu.concatenate %95, %96, %97, %98 in 1 : vector<8x4xf32>, vector<8x4xf32>, vector<8x4xf32>, vector<8x4xf32> -> vector<8x16xf32>
    %100 = arith.addf %99, %94 : vector<8x16xf32>
    %101 = vector.extract_strided_slice %100 {offsets = [0, 0], sizes = [8, 4], strides = [1, 1]} : vector<8x16xf32> to vector<8x4xf32>
    %102 = vector.extract_strided_slice %100 {offsets = [0, 4], sizes = [8, 4], strides = [1, 1]} : vector<8x16xf32> to vector<8x4xf32>
    %103 = arith.maximumf %101, %102 : vector<8x4xf32>
    %104 = vector.extract_strided_slice %100 {offsets = [0, 8], sizes = [8, 4], strides = [1, 1]} : vector<8x16xf32> to vector<8x4xf32>
    %105 = arith.maximumf %103, %104 : vector<8x4xf32>
    %106 = vector.extract_strided_slice %100 {offsets = [0, 12], sizes = [8, 4], strides = [1, 1]} : vector<8x16xf32> to vector<8x4xf32>
    %107 = arith.maximumf %105, %106 : vector<8x4xf32>
    %108 = tpu.concatenate %107, %107, %107, %107 in 1 : vector<8x4xf32>, vector<8x4xf32>, vector<8x4xf32>, vector<8x4xf32> -> vector<8x16xf32>
    %109 = arith.subf %100, %108 : vector<8x16xf32>
    %110 = math.exp %109 : vector<8x16xf32>
    %111 = vector.extract_strided_slice %110 {offsets = [0, 0], sizes = [8, 4], strides = [1, 1]} : vector<8x16xf32> to vector<8x4xf32>
    %112 = vector.extract_strided_slice %110 {offsets = [0, 4], sizes = [8, 4], strides = [1, 1]} : vector<8x16xf32> to vector<8x4xf32>
    %113 = arith.addf %111, %112 : vector<8x4xf32>
    %114 = vector.extract_strided_slice %110 {offsets = [0, 8], sizes = [8, 4], strides = [1, 1]} : vector<8x16xf32> to vector<8x4xf32>
    %115 = arith.addf %113, %114 : vector<8x4xf32>
    %116 = vector.extract_strided_slice %110 {offsets = [0, 12], sizes = [8, 4], strides = [1, 1]} : vector<8x16xf32> to vector<8x4xf32>
    %117 = arith.addf %115, %116 : vector<8x4xf32>
    %118 = tpu.reciprocal %117 {approx = true} : vector<8x4xf32> -> vector<8x4xf32>
    %119 = tpu.concatenate %118, %118, %118, %118 in 1 : vector<8x4xf32>, vector<8x4xf32>, vector<8x4xf32>, vector<8x4xf32> -> vector<8x16xf32>
    %120 = arith.mulf %110, %119 : vector<8x16xf32>
    %c0_28 = arith.constant 0 : index
    %c0_29 = arith.constant 0 : index
    %c0_30 = arith.constant 0 : index
    %121 = vector.load %arg6[%c0_28, %c0_29, %c0_30] : memref<1x8x32xf32, #tpu.memory_space<vmem>>, vector<1x8x32xf32>
    %122 = vector.shape_cast %121 : vector<1x8x32xf32> to vector<8x32xf32>
    %123 = vector.extract_strided_slice %120 {offsets = [0, 0], sizes = [8, 4], strides = [1, 1]} : vector<8x16xf32> to vector<8x4xf32>
    %c0_31 = arith.constant 0 : index
    %c0_32 = arith.constant 0 : index
    %124 = vector.load %arg11[%c0_31, %c0_32] : memref<4x128xf32, #tpu.memory_space<vmem>>, vector<4x128xf32>
    %cst_33 = arith.constant dense<0.000000e+00> : vector<8x128xf32>
    %125 = tpu.matmul %123, %124, %cst_33 {dimension_numbers = #tpu.dot_dimension_numbers<[1], [0], [0], [1], [0, 0, 1, 1], [], []>} : vector<8x4xf32>, vector<4x128xf32>, vector<8x128xf32> -> vector<8x128xf32>
    %126 = vector.extract_strided_slice %125 {offsets = [0, 0], sizes = [8, 64], strides = [1, 1]} : vector<8x128xf32> to vector<8x64xf32>
    %127 = vector.extract_strided_slice %125 {offsets = [0, 64], sizes = [8, 32], strides = [1, 1]} : vector<8x128xf32> to vector<8x32xf32>
    %128 = vector.extract_strided_slice %125 {offsets = [0, 96], sizes = [8, 32], strides = [1, 1]} : vector<8x128xf32> to vector<8x32xf32>
    %129 = vector.extract_strided_slice %122 {offsets = [0, 0], sizes = [8, 8], strides = [1, 1]} : vector<8x32xf32> to vector<8x8xf32>
    %130 = tpu.concatenate %129, %129, %129, %129 in 1 : vector<8x8xf32>, vector<8x8xf32>, vector<8x8xf32>, vector<8x8xf32> -> vector<8x32xf32>
    %131 = vector.extract_strided_slice %24 {offsets = [0, 64], sizes = [8, 64], strides = [1, 1]} : vector<32x272xf32> to vector<8x64xf32>
    %132 = arith.mulf %126, %131 : vector<8x64xf32>
    %133 = vector.extract_strided_slice %45 {offsets = [0, 16], sizes = [8, 32], strides = [1, 1]} : vector<32x48xf32> to vector<8x32xf32>
    %134 = arith.mulf %127, %133 : vector<8x32xf32>
    %135 = vector.extract_strided_slice %56 {offsets = [0, 16], sizes = [8, 32], strides = [1, 1]} : vector<32x48xf32> to vector<8x32xf32>
    %136 = arith.mulf %127, %135 : vector<8x32xf32>
    %137 = vector.extract_strided_slice %67 {offsets = [0, 16], sizes = [8, 32], strides = [1, 1]} : vector<32x48xf32> to vector<8x32xf32>
    %138 = arith.mulf %127, %137 : vector<8x32xf32>
    %139 = arith.mulf %128, %130 : vector<8x32xf32>
    %140 = vector.extract_strided_slice %120 {offsets = [0, 4], sizes = [8, 4], strides = [1, 1]} : vector<8x16xf32> to vector<8x4xf32>
    %c0_34 = arith.constant 0 : index
    %c0_35 = arith.constant 0 : index
    %141 = vector.load %arg11[%c0_34, %c0_35] : memref<4x128xf32, #tpu.memory_space<vmem>>, vector<4x128xf32>
    %cst_36 = arith.constant dense<0.000000e+00> : vector<8x128xf32>
    %142 = tpu.matmul %140, %141, %cst_36 {dimension_numbers = #tpu.dot_dimension_numbers<[1], [0], [0], [1], [0, 0, 1, 1], [], []>} : vector<8x4xf32>, vector<4x128xf32>, vector<8x128xf32> -> vector<8x128xf32>
    %143 = vector.extract_strided_slice %142 {offsets = [0, 0], sizes = [8, 64], strides = [1, 1]} : vector<8x128xf32> to vector<8x64xf32>
    %144 = vector.extract_strided_slice %142 {offsets = [0, 64], sizes = [8, 32], strides = [1, 1]} : vector<8x128xf32> to vector<8x32xf32>
    %145 = vector.extract_strided_slice %142 {offsets = [0, 96], sizes = [8, 32], strides = [1, 1]} : vector<8x128xf32> to vector<8x32xf32>
    %146 = vector.extract_strided_slice %122 {offsets = [0, 8], sizes = [8, 8], strides = [1, 1]} : vector<8x32xf32> to vector<8x8xf32>
    %147 = tpu.concatenate %146, %146, %146, %146 in 1 : vector<8x8xf32>, vector<8x8xf32>, vector<8x8xf32>, vector<8x8xf32> -> vector<8x32xf32>
    %148 = vector.extract_strided_slice %24 {offsets = [8, 64], sizes = [8, 64], strides = [1, 1]} : vector<32x272xf32> to vector<8x64xf32>
    %149 = arith.mulf %143, %148 : vector<8x64xf32>
    %150 = vector.extract_strided_slice %45 {offsets = [8, 16], sizes = [8, 32], strides = [1, 1]} : vector<32x48xf32> to vector<8x32xf32>
    %151 = arith.mulf %144, %150 : vector<8x32xf32>
    %152 = vector.extract_strided_slice %56 {offsets = [8, 16], sizes = [8, 32], strides = [1, 1]} : vector<32x48xf32> to vector<8x32xf32>
    %153 = arith.mulf %144, %152 : vector<8x32xf32>
    %154 = vector.extract_strided_slice %67 {offsets = [8, 16], sizes = [8, 32], strides = [1, 1]} : vector<32x48xf32> to vector<8x32xf32>
    %155 = arith.mulf %144, %154 : vector<8x32xf32>
    %156 = arith.mulf %145, %147 : vector<8x32xf32>
    %157 = arith.addf %132, %149 : vector<8x64xf32>
    %158 = arith.addf %134, %151 : vector<8x32xf32>
    %159 = arith.addf %136, %153 : vector<8x32xf32>
    %160 = arith.addf %138, %155 : vector<8x32xf32>
    %161 = arith.addf %139, %156 : vector<8x32xf32>
    %162 = vector.extract_strided_slice %120 {offsets = [0, 8], sizes = [8, 4], strides = [1, 1]} : vector<8x16xf32> to vector<8x4xf32>
    %c0_37 = arith.constant 0 : index
    %c0_38 = arith.constant 0 : index
    %163 = vector.load %arg11[%c0_37, %c0_38] : memref<4x128xf32, #tpu.memory_space<vmem>>, vector<4x128xf32>
    %cst_39 = arith.constant dense<0.000000e+00> : vector<8x128xf32>
    %164 = tpu.matmul %162, %163, %cst_39 {dimension_numbers = #tpu.dot_dimension_numbers<[1], [0], [0], [1], [0, 0, 1, 1], [], []>} : vector<8x4xf32>, vector<4x128xf32>, vector<8x128xf32> -> vector<8x128xf32>
    %165 = vector.extract_strided_slice %164 {offsets = [0, 0], sizes = [8, 64], strides = [1, 1]} : vector<8x128xf32> to vector<8x64xf32>
    %166 = vector.extract_strided_slice %164 {offsets = [0, 64], sizes = [8, 32], strides = [1, 1]} : vector<8x128xf32> to vector<8x32xf32>
    %167 = vector.extract_strided_slice %164 {offsets = [0, 96], sizes = [8, 32], strides = [1, 1]} : vector<8x128xf32> to vector<8x32xf32>
    %168 = vector.extract_strided_slice %122 {offsets = [0, 16], sizes = [8, 8], strides = [1, 1]} : vector<8x32xf32> to vector<8x8xf32>
    %169 = tpu.concatenate %168, %168, %168, %168 in 1 : vector<8x8xf32>, vector<8x8xf32>, vector<8x8xf32>, vector<8x8xf32> -> vector<8x32xf32>
    %170 = vector.extract_strided_slice %24 {offsets = [16, 64], sizes = [8, 64], strides = [1, 1]} : vector<32x272xf32> to vector<8x64xf32>
    %171 = arith.mulf %165, %170 : vector<8x64xf32>
    %172 = vector.extract_strided_slice %45 {offsets = [16, 16], sizes = [8, 32], strides = [1, 1]} : vector<32x48xf32> to vector<8x32xf32>
    %173 = arith.mulf %166, %172 : vector<8x32xf32>
    %174 = vector.extract_strided_slice %56 {offsets = [16, 16], sizes = [8, 32], strides = [1, 1]} : vector<32x48xf32> to vector<8x32xf32>
    %175 = arith.mulf %166, %174 : vector<8x32xf32>
    %176 = vector.extract_strided_slice %67 {offsets = [16, 16], sizes = [8, 32], strides = [1, 1]} : vector<32x48xf32> to vector<8x32xf32>
    %177 = arith.mulf %166, %176 : vector<8x32xf32>
    %178 = arith.mulf %167, %169 : vector<8x32xf32>
    %179 = arith.addf %157, %171 : vector<8x64xf32>
    %180 = arith.addf %158, %173 : vector<8x32xf32>
    %181 = arith.addf %159, %175 : vector<8x32xf32>
    %182 = arith.addf %160, %177 : vector<8x32xf32>
    %183 = arith.addf %161, %178 : vector<8x32xf32>
    %184 = vector.extract_strided_slice %120 {offsets = [0, 12], sizes = [8, 4], strides = [1, 1]} : vector<8x16xf32> to vector<8x4xf32>
    %c0_40 = arith.constant 0 : index
    %c0_41 = arith.constant 0 : index
    %185 = vector.load %arg11[%c0_40, %c0_41] : memref<4x128xf32, #tpu.memory_space<vmem>>, vector<4x128xf32>
    %cst_42 = arith.constant dense<0.000000e+00> : vector<8x128xf32>
    %186 = tpu.matmul %184, %185, %cst_42 {dimension_numbers = #tpu.dot_dimension_numbers<[1], [0], [0], [1], [0, 0, 1, 1], [], []>} : vector<8x4xf32>, vector<4x128xf32>, vector<8x128xf32> -> vector<8x128xf32>
    %187 = vector.extract_strided_slice %186 {offsets = [0, 0], sizes = [8, 64], strides = [1, 1]} : vector<8x128xf32> to vector<8x64xf32>
    %188 = vector.extract_strided_slice %186 {offsets = [0, 64], sizes = [8, 32], strides = [1, 1]} : vector<8x128xf32> to vector<8x32xf32>
    %189 = vector.extract_strided_slice %186 {offsets = [0, 96], sizes = [8, 32], strides = [1, 1]} : vector<8x128xf32> to vector<8x32xf32>
    %190 = vector.extract_strided_slice %122 {offsets = [0, 24], sizes = [8, 8], strides = [1, 1]} : vector<8x32xf32> to vector<8x8xf32>
    %191 = tpu.concatenate %190, %190, %190, %190 in 1 : vector<8x8xf32>, vector<8x8xf32>, vector<8x8xf32>, vector<8x8xf32> -> vector<8x32xf32>
    %192 = vector.extract_strided_slice %24 {offsets = [24, 64], sizes = [8, 64], strides = [1, 1]} : vector<32x272xf32> to vector<8x64xf32>
    %193 = arith.mulf %187, %192 : vector<8x64xf32>
    %194 = vector.extract_strided_slice %45 {offsets = [24, 16], sizes = [8, 32], strides = [1, 1]} : vector<32x48xf32> to vector<8x32xf32>
    %195 = arith.mulf %188, %194 : vector<8x32xf32>
    %196 = vector.extract_strided_slice %56 {offsets = [24, 16], sizes = [8, 32], strides = [1, 1]} : vector<32x48xf32> to vector<8x32xf32>
    %197 = arith.mulf %188, %196 : vector<8x32xf32>
    %198 = vector.extract_strided_slice %67 {offsets = [24, 16], sizes = [8, 32], strides = [1, 1]} : vector<32x48xf32> to vector<8x32xf32>
    %199 = arith.mulf %188, %198 : vector<8x32xf32>
    %200 = arith.mulf %189, %191 : vector<8x32xf32>
    %201 = arith.addf %179, %193 : vector<8x64xf32>
    %202 = arith.addf %180, %195 : vector<8x32xf32>
    %203 = arith.addf %181, %197 : vector<8x32xf32>
    %204 = arith.addf %182, %199 : vector<8x32xf32>
    %205 = arith.addf %183, %200 : vector<8x32xf32>
    %206 = arith.mulf %202, %202 : vector<8x32xf32>
    %207 = arith.mulf %203, %203 : vector<8x32xf32>
    %208 = arith.addf %206, %207 : vector<8x32xf32>
    %209 = arith.mulf %204, %204 : vector<8x32xf32>
    %210 = arith.addf %208, %209 : vector<8x32xf32>
    %cst_43 = arith.constant 9.99999997E-7 : f32
    %211 = vector.broadcast %cst_43 : f32 to vector<8x32xf32>
    %212 = arith.addf %210, %211 : vector<8x32xf32>
    %213 = math.sqrt %212 : vector<8x32xf32>
    %214 = tpu.concatenate %201, %202, %203, %204, %213, %205 in 1 : vector<8x64xf32>, vector<8x32xf32>, vector<8x32xf32>, vector<8x32xf32>, vector<8x32xf32>, vector<8x32xf32> -> vector<8x224xf32>
    %c0_44 = arith.constant 0 : index
    %c0_45 = arith.constant 0 : index
    %215 = vector.load %arg12[%c0_44, %c0_45] : memref<224x32xf32, #tpu.memory_space<vmem>>, vector<224x32xf32>
    %cst_46 = arith.constant dense<0.000000e+00> : vector<8x32xf32>
    %216 = tpu.matmul %214, %215, %cst_46 {dimension_numbers = #tpu.dot_dimension_numbers<[1], [0], [0], [1], [0, 0, 1, 1], [], []>} : vector<8x224xf32>, vector<224x32xf32>, vector<8x32xf32> -> vector<8x32xf32>
    %c0_47 = arith.constant 0 : index
    %c0_48 = arith.constant 0 : index
    %217 = vector.load %arg13[%c0_47, %c0_48] : memref<1x32xf32, #tpu.memory_space<vmem>>, vector<1x32xf32>
    %218 = vector.broadcast %217 : vector<1x32xf32> to vector<8x32xf32>
    %219 = arith.addf %216, %218 : vector<8x32xf32>
    %c0_49 = arith.constant 0 : index
    %c0_50 = arith.constant 0 : index
    %c0_51 = arith.constant 0 : index
    %220 = vector.load %arg14[%c0_49, %c0_50, %c0_51] : memref<1x8x32xf32, #tpu.memory_space<vmem>>, vector<1x8x32xf32>
    %221 = vector.shape_cast %220 : vector<1x8x32xf32> to vector<8x32xf32>
    %222 = vector.shape_cast %219 : vector<8x32xf32> to vector<1x8x32xf32>
    tpu.vector_store %arg14[%c0_49, %c0_50, %c0_51], %222 {strides = array<i32>} : memref<1x8x32xf32, #tpu.memory_space<vmem>>, vector<1x8x32xf32>,
    return
  }
  func.func @transform_0(%arg0: i32, %arg1: i32) -> (i32, i32, i32) {
    %c0_i32 = arith.constant 0 : i32
    %c0_i32_0 = arith.constant 0 : i32
    %c0_i32_1 = arith.constant 0 : i32
    return %arg0, %c0_i32, %c0_i32_0 : i32, i32, i32
  }
  func.func @transform_1(%arg0: i32, %arg1: i32) -> (i32, i32, i32) {
    %c0_i32 = arith.constant 0 : i32
    %c0_i32_0 = arith.constant 0 : i32
    return %arg0, %arg1, %c0_i32 : i32, i32, i32
  }
  func.func @transform_2(%arg0: i32, %arg1: i32) -> (i32, i32, i32) {
    %c0_i32 = arith.constant 0 : i32
    %c0_i32_0 = arith.constant 0 : i32
    return %arg0, %arg1, %c0_i32 : i32, i32, i32
  }
  func.func @transform_3(%arg0: i32, %arg1: i32) -> (i32, i32, i32) {
    %c0_i32 = arith.constant 0 : i32
    %c0_i32_0 = arith.constant 0 : i32
    return %arg0, %arg1, %c0_i32 : i32, i32, i32
  }
  func.func @transform_4(%arg0: i32, %arg1: i32) -> (i32, i32, i32) {
    %c0_i32 = arith.constant 0 : i32
    %c0_i32_0 = arith.constant 0 : i32
    return %arg0, %arg1, %c0_i32 : i32, i32, i32
  }
  func.func @transform_5(%arg0: i32, %arg1: i32) -> (i32, i32, i32) {
    %c0_i32 = arith.constant 0 : i32
    %c0_i32_0 = arith.constant 0 : i32
    return %arg0, %arg1, %c0_i32 : i32, i32, i32
  }
  func.func @transform_6(%arg0: i32, %arg1: i32) -> (i32, i32) {
    %c0_i32 = arith.constant 0 : i32
    %c0_i32_0 = arith.constant 0 : i32
    %c0_i32_1 = arith.constant 0 : i32
    return %c0_i32, %c0_i32_0 : i32, i32
  }
  func.func @transform_7(%arg0: i32, %arg1: i32) -> (i32, i32) {
    %c0_i32 = arith.constant 0 : i32
    %c0_i32_0 = arith.constant 0 : i32
    %c0_i32_1 = arith.constant 0 : i32
    return %c0_i32, %c0_i32_0 : i32, i32
  }
  func.func @transform_8(%arg0: i32, %arg1: i32) -> (i32, i32) {
    %c0_i32 = arith.constant 0 : i32
    %c0_i32_0 = arith.constant 0 : i32
    %c0_i32_1 = arith.constant 0 : i32
    return %c0_i32, %c0_i32_0 : i32, i32
  }
  func.func @transform_9(%arg0: i32, %arg1: i32) -> (i32, i32) {
    %c0_i32 = arith.constant 0 : i32
    %c0_i32_0 = arith.constant 0 : i32
    %c0_i32_1 = arith.constant 0 : i32
    return %c0_i32, %c0_i32_0 : i32, i32
  }
  func.func @transform_10(%arg0: i32, %arg1: i32) -> (i32, i32) {
    %c0_i32 = arith.constant 0 : i32
    %c0_i32_0 = arith.constant 0 : i32
    %c0_i32_1 = arith.constant 0 : i32
    return %c0_i32, %c0_i32_0 : i32, i32
  }
  func.func @transform_11(%arg0: i32, %arg1: i32) -> (i32, i32) {
    %c0_i32 = arith.constant 0 : i32
    %c0_i32_0 = arith.constant 0 : i32
    %c0_i32_1 = arith.constant 0 : i32
    return %c0_i32, %c0_i32_0 : i32, i32
  }
  func.func @transform_12(%arg0: i32, %arg1: i32) -> (i32, i32, i32) {
    %c0_i32 = arith.constant 0 : i32
    %c0_i32_0 = arith.constant 0 : i32
    return %arg0, %arg1, %c0_i32 : i32, i32, i32
  }
}

</mosaic_0001>

<llo_original>
// kernel: tpu_custom_call.1
$region0: #{tpu_custom_call.1}
  #allocation0 [shape = 'u32[]', space=smem, size = 0x4, offset = 0x4, fixed_abs, tag = 'smem constant byte address 0x4 - core index']
  #allocation1 [shape = 'u32[144,128]{1,0:T(1,128)}', space=vmem, size = 0x12000, scoped, tag = 'internal scratch']
  %s0 = inlined_call_operand.vmem [shape: bf16[2,8,272], index: 0, kind: input, shape index: {}]
  %s1 = inlined_call_operand.vmem [shape: f32[2,8,32], index: 1, kind: input, shape index: {}]
  %s2 = inlined_call_operand.vmem [shape: s32[2,8,4], index: 2, kind: input, shape index: {}]
  %s3 = inlined_call_operand.vmem [shape: f32[2,8,36], index: 3, kind: input, shape index: {}]
  %s4 = inlined_call_operand.vmem [shape: f32[2,8,32], index: 4, kind: input, shape index: {}]
  %s5 = inlined_call_operand.vmem [shape: f32[2,8,4], index: 5, kind: input, shape index: {}]
  %s6 = inlined_call_operand.vmem [shape: f32[32,112], index: 6, kind: input, shape index: {}]
  %s7 = inlined_call_operand.vmem [shape: f32[80,4], index: 7, kind: input, shape index: {}]
  %s8 = inlined_call_operand.vmem [shape: f32[36,16], index: 8, kind: input, shape index: {}]
  %s9 = inlined_call_operand.vmem [shape: f32[4,128], index: 9, kind: input, shape index: {}]
  %s10 = inlined_call_operand.vmem [shape: f32[224,32], index: 10, kind: input, shape index: {}]
  %s11 = inlined_call_operand.vmem [shape: f32[1,32], index: 11, kind: input, shape index: {}]
  %s12 = inlined_call_operand.hbm [shape: f32[2,8,32], index: 12, kind: output, shape index: {}]
  %s13 = sld [smem:[#allocation0]]
  $region81: #{tpu_custom_call.1} parent=0
    _
  %s15 = ssub.s32 1, %s13
  %s16 = scalar_select 0, %s15, %s13
  $region1: #{tpu_custom_call.1} parent=0
    #allocation2 [shape = 'u8[8192]{0}', space=vmem, size = 0x2000, scoped, tag = 'output window, operand 0']
    #allocation3 [shape = 's32[2]{0}', space=sflag, size = 0x8, scoped, tag = 'scoped memory for tpu_custom_call.1']
    %17 = vsyncpa [#allocation3], 0
    %s18 = scalar_lea.sflag [#allocation3], 1
    %19 = vsyncpa %s18, 0
    loop: start=0, step=1, limit=4
    $region2: #{tpu_custom_call.1} parent=1 // loop_pre_header
      _
    $region3: #{tpu_custom_call.1} parent=1 // loop_header
      %s21 = sphi 0, %s25
      %p22 = scmp.ge.s32.totalorder %s21, 4
      %s28 = sphi 0, %s40
      %s29 = sphi 0, %s36
      %s30 = sphi 0, %s28
      %s31 = sphi 0, %s29
      %s32 = sphi 0, %s30
      %s33 = sphi 0, %s31
      %s43 = sphi 0, %s45
      %s46 = sphi 0, %s43
      %s47 = sphi 0, %s46
      %s63 = sphi 0, %s47
      %s71 = sphi 0, %s73
      %s74 = sphi 0, %s71
      %s75 = sphi 0, %s74
      %s91 = sphi 0, %s75
      %s99 = sphi 0, %s101
      %s102 = sphi 0, %s99
      %s103 = sphi 0, %s102
      %s119 = sphi 0, %s103
      %s127 = sphi 0, %s129
      %s130 = sphi 0, %s127
      %s131 = sphi 0, %s130
      %s147 = sphi 0, %s131
      %s155 = sphi 0, %s157
      %s158 = sphi 0, %s155
      %s159 = sphi 0, %s158
      %s175 = sphi 0, %s159
      %s183 = sphi 0, %s185
      %s186 = sphi 0, %s183
      %s187 = sphi 0, %s186
      %s203 = sphi 0, %s187
      %s207 = sphi 0, %s207
      %s209 = sphi 0, %s207
      %s210 = sphi 0, %s209
      %s224 = sphi 0, %s210
      %s228 = sphi 0, %s228
      %s230 = sphi 0, %s228
      %s231 = sphi 0, %s230
      %s245 = sphi 0, %s231
      %s249 = sphi 0, %s249
      %s251 = sphi 0, %s249
      %s252 = sphi 0, %s251
      %s266 = sphi 0, %s252
      %s270 = sphi 0, %s270
      %s272 = sphi 0, %s270
      %s273 = sphi 0, %s272
      %s287 = sphi 0, %s273
      %s291 = sphi 0, %s291
      %s293 = sphi 0, %s291
      %s294 = sphi 0, %s293
      %s308 = sphi 0, %s294
      %s312 = sphi 0, %s312
      %s314 = sphi 0, %s312
      %s315 = sphi 0, %s314
      %s329 = sphi 0, %s315
      %s337 = sphi 0, %s339
      %s340 = sphi 0, %s337
      %s341 = sphi 0, %s340
      %s357 = sphi 0, %s341
    $region4: #{tpu_custom_call.1} parent=1 // loop_header_branch
      %24 = sbr.rel (%p22) target = $region8
    $region5: #{tpu_custom_call.1} parent=1 // loop_body
      %s26 = ssub.s32 %s21, 1
      %s27 = ssub.s32 %s21, 2
      %s34 = sadd.s32 1, %s29
      %p35 = scmp.ge.s32.totalorder %s34, 1
      %s36 = scalar_select %p35, 0, %s34
      %s37 = sadd.s32 1, %s28
      %s38 = scalar_select %p35, %s37, %s28
      %p39 = scmp.ge.s32.totalorder %s38, 2
      %s40 = scalar_select %p39, 0, %s38
      %s41 = ssub.s32 %s28, %s40
      %p42 = scmp.eq.s32.totalorder %s41, 0
      %s44 = sadd.s32 %s43, 1
      %s45 = scalar_select %p42, %s43, %s44
      %p48 = pneg %p42
      %p49 = scmp.eq.s32.totalorder %s21, 1
      %p50 = por %p48, %p49
      %p51 = scmp.ne.s32.totalorder %s43, %s46
      %p52 = scmp.eq.s32.totalorder %s21, 0
      %p53 = por %p51, %p52
      %p54 = scmp.ne.s32.totalorder %s43, %s46
      %p55 = scmp.eq.s32.totalorder %s26, 1
      %p56 = por %p54, %p55
      %p57 = scmp.ne.s32.totalorder %s46, %s47
      %p58 = scmp.eq.s32.totalorder %s26, 0
      %p59 = por %p57, %p58
      %p60 = scmp.ne.s32.totalorder %s46, %s47
      %p61 = scmp.eq.s32.totalorder %s27, 1
      %p62 = por %p60, %p61
      %p64 = scmp.ne.s32.totalorder %s47, %s63
      %p65 = scmp.eq.s32.totalorder %s27, 0
      %p66 = por %p64, %p65
      %s67 = ssub.s32 %s28, %s40
      %s68 = ssub.s32 %s29, %s36
      %s69 = sor.u32 %s67, %s68
      %p70 = scmp.eq.s32.totalorder %s69, 0
      %s72 = sadd.s32 %s71, 1
      %s73 = scalar_select %p70, %s71, %s72
      %p76 = pneg %p70
      %p77 = scmp.eq.s32.totalorder %s21, 1
      %p78 = por %p76, %p77
      %p79 = scmp.ne.s32.totalorder %s71, %s74
      %p80 = scmp.eq.s32.totalorder %s21, 0
      %p81 = por %p79, %p80
      %p82 = scmp.ne.s32.totalorder %s71, %s74
      %p83 = scmp.eq.s32.totalorder %s26, 1
      %p84 = por %p82, %p83
      %p85 = scmp.ne.s32.totalorder %s74, %s75
      %p86 = scmp.eq.s32.totalorder %s26, 0
      %p87 = por %p85, %p86
      %p88 = scmp.ne.s32.totalorder %s74, %s75
      %p89 = scmp.eq.s32.totalorder %s27, 1
      %p90 = por %p88, %p89
      %p92 = scmp.ne.s32.totalorder %s75, %s91
      %p93 = scmp.eq.s32.totalorder %s27, 0
      %p94 = por %p92, %p93
      %s95 = ssub.s32 %s28, %s40
      %s96 = ssub.s32 %s29, %s36
      %s97 = sor.u32 %s95, %s96
      %p98 = scmp.eq.s32.totalorder %s97, 0
      %s100 = sadd.s32 %s99, 1
      %s101 = scalar_select %p98, %s99, %s100
      %p104 = pneg %p98
      %p105 = scmp.eq.s32.totalorder %s21, 1
      %p106 = por %p104, %p105
      %p107 = scmp.ne.s32.totalorder %s99, %s102
      %p108 = scmp.eq.s32.totalorder %s21, 0
      %p109 = por %p107, %p108
      %p110 = scmp.ne.s32.totalorder %s99, %s102
      %p111 = scmp.eq.s32.totalorder %s26, 1
      %p112 = por %p110, %p111
      %p113 = scmp.ne.s32.totalorder %s102, %s103
      %p114 = scmp.eq.s32.totalorder %s26, 0
      %p115 = por %p113, %p114
      %p116 = scmp.ne.s32.totalorder %s102, %s103
      %p117 = scmp.eq.s32.totalorder %s27, 1
      %p118 = por %p116, %p117
      %p120 = scmp.ne.s32.totalorder %s103, %s119
      %p121 = scmp.eq.s32.totalorder %s27, 0
      %p122 = por %p120, %p121
      %s123 = ssub.s32 %s28, %s40
      %s124 = ssub.s32 %s29, %s36
      %s125 = sor.u32 %s123, %s124
      %p126 = scmp.eq.s32.totalorder %s125, 0
      %s128 = sadd.s32 %s127, 1
      %s129 = scalar_select %p126, %s127, %s128
      %p132 = pneg %p126
      %p133 = scmp.eq.s32.totalorder %s21, 1
      %p134 = por %p132, %p133
      %p135 = scmp.ne.s32.totalorder %s127, %s130
      %p136 = scmp.eq.s32.totalorder %s21, 0
      %p137 = por %p135, %p136
      %p138 = scmp.ne.s32.totalorder %s127, %s130
      %p139 = scmp.eq.s32.totalorder %s26, 1
      %p140 = por %p138, %p139
      %p141 = scmp.ne.s32.totalorder %s130, %s131
      %p142 = scmp.eq.s32.totalorder %s26, 0
      %p143 = por %p141, %p142
      %p144 = scmp.ne.s32.totalorder %s130, %s131
      %p145 = scmp.eq.s32.totalorder %s27, 1
      %p146 = por %p144, %p145
      %p148 = scmp.ne.s32.totalorder %s131, %s147
      %p149 = scmp.eq.s32.totalorder %s27, 0
      %p150 = por %p148, %p149
      %s151 = ssub.s32 %s28, %s40
      %s152 = ssub.s32 %s29, %s36
      %s153 = sor.u32 %s151, %s152
      %p154 = scmp.eq.s32.totalorder %s153, 0
      %s156 = sadd.s32 %s155, 1
      %s157 = scalar_select %p154, %s155, %s156
      %p160 = pneg %p154
      %p161 = scmp.eq.s32.totalorder %s21, 1
      %p162 = por %p160, %p161
      %p163 = scmp.ne.s32.totalorder %s155, %s158
      %p164 = scmp.eq.s32.totalorder %s21, 0
      %p165 = por %p163, %p164
      %p166 = scmp.ne.s32.totalorder %s155, %s158
      %p167 = scmp.eq.s32.totalorder %s26, 1
      %p168 = por %p166, %p167
      %p169 = scmp.ne.s32.totalorder %s158, %s159
      %p170 = scmp.eq.s32.totalorder %s26, 0
      %p171 = por %p169, %p170
      %p172 = scmp.ne.s32.totalorder %s158, %s159
      %p173 = scmp.eq.s32.totalorder %s27, 1
      %p174 = por %p172, %p173
      %p176 = scmp.ne.s32.totalorder %s159, %s175
      %p177 = scmp.eq.s32.totalorder %s27, 0
      %p178 = por %p176, %p177
      %s179 = ssub.s32 %s28, %s40
      %s180 = ssub.s32 %s29, %s36
      %s181 = sor.u32 %s179, %s180
      %p182 = scmp.eq.s32.totalorder %s181, 0
      %s184 = sadd.s32 %s183, 1
      %s185 = scalar_select %p182, %s183, %s184
      %p188 = pneg %p182
      %p189 = scmp.eq.s32.totalorder %s21, 1
      %p190 = por %p188, %p189
      %p191 = scmp.ne.s32.totalorder %s183, %s186
      %p192 = scmp.eq.s32.totalorder %s21, 0
      %p193 = por %p191, %p192
      %p194 = scmp.ne.s32.totalorder %s183, %s186
      %p195 = scmp.eq.s32.totalorder %s26, 1
      %p196 = por %p194, %p195
      %p197 = scmp.ne.s32.totalorder %s186, %s187
      %p198 = scmp.eq.s32.totalorder %s26, 0
      %p199 = por %p197, %p198
      %p200 = scmp.ne.s32.totalorder %s186, %s187
      %p201 = scmp.eq.s32.totalorder %s27, 1
      %p202 = por %p200, %p201
      %p204 = scmp.ne.s32.totalorder %s187, %s203
      %p205 = scmp.eq.s32.totalorder %s27, 0
      %p206 = por %p204, %p205
      %s208 = sadd.s32 %s207, 1
      %p211 = scmp.eq.s32.totalorder %s21, 1
      %p212 = scmp.ne.s32.totalorder %s207, %s209
      %p213 = scmp.eq.s32.totalorder %s21, 0
      %p214 = por %p212, %p213
      %p215 = scmp.ne.s32.totalorder %s207, %s209
      %p216 = scmp.eq.s32.totalorder %s26, 1
      %p217 = por %p215, %p216
      %p218 = scmp.ne.s32.totalorder %s209, %s210
      %p219 = scmp.eq.s32.totalorder %s26, 0
      %p220 = por %p218, %p219
      %p221 = scmp.ne.s32.totalorder %s209, %s210
      %p222 = scmp.eq.s32.totalorder %s27, 1
      %p223 = por %p221, %p222
      %p225 = scmp.ne.s32.totalorder %s210, %s224
      %p226 = scmp.eq.s32.totalorder %s27, 0
      %p227 = por %p225, %p226
      %s229 = sadd.s32 %s228, 1
      %p232 = scmp.eq.s32.totalorder %s21, 1
      %p233 = scmp.ne.s32.totalorder %s228, %s230
      %p234 = scmp.eq.s32.totalorder %s21, 0
      %p235 = por %p233, %p234
      %p236 = scmp.ne.s32.totalorder %s228, %s230
      %p237 = scmp.eq.s32.totalorder %s26, 1
      %p238 = por %p236, %p237
      %p239 = scmp.ne.s32.totalorder %s230, %s231
      %p240 = scmp.eq.s32.totalorder %s26, 0
      %p241 = por %p239, %p240
      %p242 = scmp.ne.s32.totalorder %s230, %s231
      %p243 = scmp.eq.s32.totalorder %s27, 1
      %p244 = por %p242, %p243
      %p246 = scmp.ne.s32.totalorder %s231, %s245
      %p247 = scmp.eq.s32.totalorder %s27, 0
      %p248 = por %p246, %p247
      %s250 = sadd.s32 %s249, 1
      %p253 = scmp.eq.s32.totalorder %s21, 1
      %p254 = scmp.ne.s32.totalorder %s249, %s251
      %p255 = scmp.eq.s32.totalorder %s21, 0
      %p256 = por %p254, %p255
      %p257 = scmp.ne.s32.totalorder %s249, %s251
      %p258 = scmp.eq.s32.totalorder %s26, 1
      %p259 = por %p257, %p258
      %p260 = scmp.ne.s32.totalorder %s251, %s252
      %p261 = scmp.eq.s32.totalorder %s26, 0
      %p262 = por %p260, %p261
      %p263 = scmp.ne.s32.totalorder %s251, %s252
      %p264 = scmp.eq.s32.totalorder %s27, 1
      %p265 = por %p263, %p264
      %p267 = scmp.ne.s32.totalorder %s252, %s266
      %p268 = scmp.eq.s32.totalorder %s27, 0
      %p269 = por %p267, %p268
      %s271 = sadd.s32 %s270, 1
      %p274 = scmp.eq.s32.totalorder %s21, 1
      %p275 = scmp.ne.s32.totalorder %s270, %s272
      %p276 = scmp.eq.s32.totalorder %s21, 0
      %p277 = por %p275, %p276
      %p278 = scmp.ne.s32.totalorder %s270, %s272
      %p279 = scmp.eq.s32.totalorder %s26, 1
      %p280 = por %p278, %p279
      %p281 = scmp.ne.s32.totalorder %s272, %s273
      %p282 = scmp.eq.s32.totalorder %s26, 0
      %p283 = por %p281, %p282
      %p284 = scmp.ne.s32.totalorder %s272, %s273
      %p285 = scmp.eq.s32.totalorder %s27, 1
      %p286 = por %p284, %p285
      %p288 = scmp.ne.s32.totalorder %s273, %s287
      %p289 = scmp.eq.s32.totalorder %s27, 0
      %p290 = por %p288, %p289
      %s292 = sadd.s32 %s291, 1
      %p295 = scmp.eq.s32.totalorder %s21, 1
      %p296 = scmp.ne.s32.totalorder %s291, %s293
      %p297 = scmp.eq.s32.totalorder %s21, 0
      %p298 = por %p296, %p297
      %p299 = scmp.ne.s32.totalorder %s291, %s293
      %p300 = scmp.eq.s32.totalorder %s26, 1
      %p301 = por %p299, %p300
      %p302 = scmp.ne.s32.totalorder %s293, %s294
      %p303 = scmp.eq.s32.totalorder %s26, 0
      %p304 = por %p302, %p303
      %p305 = scmp.ne.s32.totalorder %s293, %s294
      %p306 = scmp.eq.s32.totalorder %s27, 1
      %p307 = por %p305, %p306
      %p309 = scmp.ne.s32.totalorder %s294, %s308
      %p310 = scmp.eq.s32.totalorder %s27, 0
      %p311 = por %p309, %p310
      %s313 = sadd.s32 %s312, 1
      %p316 = scmp.eq.s32.totalorder %s21, 1
      %p317 = scmp.ne.s32.totalorder %s312, %s314
      %p318 = scmp.eq.s32.totalorder %s21, 0
      %p319 = por %p317, %p318
      %p320 = scmp.ne.s32.totalorder %s312, %s314
      %p321 = scmp.eq.s32.totalorder %s26, 1
      %p322 = por %p320, %p321
      %p323 = scmp.ne.s32.totalorder %s314, %s315
      %p324 = scmp.eq.s32.totalorder %s26, 0
      %p325 = por %p323, %p324
      %p326 = scmp.ne.s32.totalorder %s314, %s315
      %p327 = scmp.eq.s32.totalorder %s27, 1
      %p328 = por %p326, %p327
      %p330 = scmp.ne.s32.totalorder %s315, %s329
      %p331 = scmp.eq.s32.totalorder %s27, 0
      %p332 = por %p330, %p331
      %s333 = ssub.s32 %s28, %s40
      %s334 = ssub.s32 %s29, %s36
      %s335 = sor.u32 %s333, %s334
      %p336 = scmp.eq.s32.totalorder %s335, 0
      %s338 = sadd.s32 %s337, 1
      %s339 = scalar_select %p336, %s337, %s338
      %p342 = pneg %p336
      %p343 = scmp.eq.s32.totalorder %s21, 1
      %p344 = por %p342, %p343
      %p345 = scmp.ne.s32.totalorder %s337, %s340
      %p346 = scmp.eq.s32.totalorder %s21, 0
      %p347 = por %p345, %p346
      %p348 = scmp.ne.s32.totalorder %s337, %s340
      %p349 = scmp.eq.s32.totalorder %s26, 1
      %p350 = por %p348, %p349
      %p351 = scmp.ne.s32.totalorder %s340, %s341
      %p352 = scmp.eq.s32.totalorder %s26, 0
      %p353 = por %p351, %p352
      %p354 = scmp.ne.s32.totalorder %s340, %s341
      %p355 = scmp.eq.s32.totalorder %s27, 1
      %p356 = por %p354, %p355
      %p358 = scmp.ne.s32.totalorder %s341, %s357
      %p359 = scmp.eq.s32.totalorder %s27, 0
      %p360 = por %p358, %p359
      %p361 = scmp.le.s32.totalorder 1, %s21
      %p362 = scmp.lt.s32.totalorder %s21, 3
      %p363 = pnand %p361, %p362
      %p364 = pneg %p363
      // Predicated region
      $region9: #{tpu_custom_call.1} parent=5 // pred_check
        _
      $region10: #{tpu_custom_call.1} parent=5 // pred_check_branch
        %366 = sbr.rel (%p363) target = $region12
      $region11: #{tpu_custom_call.1} parent=5 // pred_region
        %s367 = ssub.s32 %s21, 1
        // Predicated region
        $region13: #{tpu_custom_call.1} parent=11 // pred_check
          %p368 = pneg %p220
        $region14: #{tpu_custom_call.1} parent=11 // pred_check_branch
          %370 = sbr.rel (%p368) target = $region16
        $region15: #{tpu_custom_call.1} parent=11 // pred_region
          _
        $region16: #{tpu_custom_call.1} parent=11 // pred_fallthru
          _
        // Predicated region
        $region17: #{tpu_custom_call.1} parent=11 // pred_check
          %p371 = pneg %p241
        $region18: #{tpu_custom_call.1} parent=11 // pred_check_branch
          %373 = sbr.rel (%p371) target = $region20
        $region19: #{tpu_custom_call.1} parent=11 // pred_region
          _
        $region20: #{tpu_custom_call.1} parent=11 // pred_fallthru
          _
        // Predicated region
        $region21: #{tpu_custom_call.1} parent=11 // pred_check
          %p374 = pneg %p262
        $region22: #{tpu_custom_call.1} parent=11 // pred_check_branch
          %376 = sbr.rel (%p374) target = $region24
        $region23: #{tpu_custom_call.1} parent=11 // pred_region
          _
        $region24: #{tpu_custom_call.1} parent=11 // pred_fallthru
          _
        // Predicated region
        $region25: #{tpu_custom_call.1} parent=11 // pred_check
          %p377 = pneg %p283
        $region26: #{tpu_custom_call.1} parent=11 // pred_check_branch
          %379 = sbr.rel (%p377) target = $region28
        $region27: #{tpu_custom_call.1} parent=11 // pred_region
          _
        $region28: #{tpu_custom_call.1} parent=11 // pred_fallthru
          _
        // Predicated region
        $region29: #{tpu_custom_call.1} parent=11 // pred_check
          %p380 = pneg %p304
        $region30: #{tpu_custom_call.1} parent=11 // pred_check_branch
          %382 = sbr.rel (%p380) target = $region32
        $region31: #{tpu_custom_call.1} parent=11 // pred_region
          _
        $region32: #{tpu_custom_call.1} parent=11 // pred_fallthru
          _
        // Predicated region
        $region33: #{tpu_custom_call.1} parent=11 // pred_check
          %p383 = pneg %p325
        $region34: #{tpu_custom_call.1} parent=11 // pred_check_branch
          %385 = sbr.rel (%p383) target = $region36
        $region35: #{tpu_custom_call.1} parent=11 // pred_region
          _
        $region36: #{tpu_custom_call.1} parent=11 // pred_fallthru
          _
      $region12: #{tpu_custom_call.1} parent=5 // pred_fallthru
        _
      %p386 = scmp.lt.s32.totalorder %s21, 2
      // Predicated region
      $region37: #{tpu_custom_call.1} parent=5 // pred_check
        %p387 = pneg %p386
      $region38: #{tpu_custom_call.1} parent=5 // pred_check_branch
        %389 = sbr.rel (%p387) target = $region40
      $region39: #{tpu_custom_call.1} parent=5 // pred_region
        // Predicated region
        $region41: #{tpu_custom_call.1} parent=39 // pred_check
          %p390 = pneg %p53
        $region42: #{tpu_custom_call.1} parent=39 // pred_check_branch
          %392 = sbr.rel (%p390) target = $region44
        $region43: #{tpu_custom_call.1} parent=39 // pred_region
          %p393 = scmp.lt.s32.totalorder %s28, 1
          %s394 = scalar_select %p393, %s28, 1
          %s395 = smul.addr %s394, 3
          %s396 = smul.addr %s395, 4
          %s397 = scalar_lea.vmem %s0, %s396
        $region44: #{tpu_custom_call.1} parent=39 // pred_fallthru
          _
        // Predicated region
        $region45: #{tpu_custom_call.1} parent=39 // pred_check
          %p398 = pneg %p81
        $region46: #{tpu_custom_call.1} parent=39 // pred_check_branch
          %400 = sbr.rel (%p398) target = $region48
        $region47: #{tpu_custom_call.1} parent=39 // pred_region
          %p401 = scmp.lt.s32.totalorder %s28, 1
          %s402 = scalar_select %p401, %s28, 1
          %p403 = scmp.lt.s32.totalorder %s29, 0
          %s404 = scalar_select %p403, %s29, 0
          %s405 = sadd.s32 %s404, %s402
          %s406 = smul.addr %s405, 8
          %s407 = scalar_lea.vmem %s1, %s406
        $region48: #{tpu_custom_call.1} parent=39 // pred_fallthru
          _
        // Predicated region
        $region49: #{tpu_custom_call.1} parent=39 // pred_check
          %p408 = pneg %p109
        $region50: #{tpu_custom_call.1} parent=39 // pred_check_branch
          %410 = sbr.rel (%p408) target = $region52
        $region51: #{tpu_custom_call.1} parent=39 // pred_region
          %p411 = scmp.lt.s32.totalorder %s28, 1
          %s412 = scalar_select %p411, %s28, 1
          %p413 = scmp.lt.s32.totalorder %s29, 0
          %s414 = scalar_select %p413, %s29, 0
          %s415 = sadd.s32 %s414, %s412
          %s416 = smul.addr %s415, 8
          %s417 = scalar_lea.vmem %s2, %s416
        $region52: #{tpu_custom_call.1} parent=39 // pred_fallthru
          _
        // Predicated region
        $region53: #{tpu_custom_call.1} parent=39 // pred_check
          %p418 = pneg %p137
        $region54: #{tpu_custom_call.1} parent=39 // pred_check_branch
          %420 = sbr.rel (%p418) target = $region56
        $region55: #{tpu_custom_call.1} parent=39 // pred_region
          %p421 = scmp.lt.s32.totalorder %s28, 1
          %s422 = scalar_select %p421, %s28, 1
          %p423 = scmp.lt.s32.totalorder %s29, 0
          %s424 = scalar_select %p423, %s29, 0
          %s425 = sadd.s32 %s424, %s422
          %s426 = smul.addr %s425, 8
          %s427 = scalar_lea.vmem %s3, %s426
        $region56: #{tpu_custom_call.1} parent=39 // pred_fallthru
          _
        // Predicated region
        $region57: #{tpu_custom_call.1} parent=39 // pred_check
          %p428 = pneg %p165
        $region58: #{tpu_custom_call.1} parent=39 // pred_check_branch
          %430 = sbr.rel (%p428) target = $region60
        $region59: #{tpu_custom_call.1} parent=39 // pred_region
          %p431 = scmp.lt.s32.totalorder %s28, 1
          %s432 = scalar_select %p431, %s28, 1
          %p433 = scmp.lt.s32.totalorder %s29, 0
          %s434 = scalar_select %p433, %s29, 0
          %s435 = sadd.s32 %s434, %s432
          %s436 = smul.addr %s435, 8
          %s437 = scalar_lea.vmem %s4, %s436
        $region60: #{tpu_custom_call.1} parent=39 // pred_fallthru
          _
        // Predicated region
        $region61: #{tpu_custom_call.1} parent=39 // pred_check
          %p438 = pneg %p193
        $region62: #{tpu_custom_call.1} parent=39 // pred_check_branch
          %440 = sbr.rel (%p438) target = $region64
        $region63: #{tpu_custom_call.1} parent=39 // pred_region
          %p441 = scmp.lt.s32.totalorder %s28, 1
          %s442 = scalar_select %p441, %s28, 1
          %p443 = scmp.lt.s32.totalorder %s29, 0
          %s444 = scalar_select %p443, %s29, 0
          %s445 = sadd.s32 %s444, %s442
          %s446 = smul.addr %s445, 8
          %s447 = scalar_lea.vmem %s5, %s446
        $region64: #{tpu_custom_call.1} parent=39 // pred_fallthru
          _
      $region40: #{tpu_custom_call.1} parent=5 // pred_fallthru
        _
      %p448 = scmp.le.s32.totalorder 1, %s21
      %p449 = scmp.lt.s32.totalorder %s21, 3
      %p450 = pnand %p448, %p449
      %p451 = pneg %p450
      // Predicated region
      $region65: #{tpu_custom_call.1} parent=5 // pred_check
        _
      $region66: #{tpu_custom_call.1} parent=5 // pred_check_branch
        %453 = sbr.rel (%p450) target = $region68
      $region67: #{tpu_custom_call.1} parent=5 // pred_region
        %s454 = ssub.s32 %s21, 1
        %p455 = scmp.lt.s32.totalorder %s30, 1
        %s456 = scalar_select %p455, %s30, 1
        %s457 = smul.addr %s456, 3
        %s458 = smul.addr %s457, 4
        %s459 = scalar_lea.vmem %s0, %s458
        %p460 = pneg %p59
        %p461 = pneg %p56
        %p462 = scmp.lt.s32.totalorder %s30, 1
        %s463 = scalar_select %p462, %s30, 1
        %p464 = scmp.lt.s32.totalorder %s31, 0
        %s465 = scalar_select %p464, %s31, 0
        %s466 = sadd.s32 %s465, %s463
        %s467 = smul.addr %s466, 8
        %s468 = scalar_lea.vmem %s1, %s467
        %p469 = pneg %p87
        %p470 = pneg %p84
        %p471 = scmp.lt.s32.totalorder %s30, 1
        %s472 = scalar_select %p471, %s30, 1
        %p473 = scmp.lt.s32.totalorder %s31, 0
        %s474 = scalar_select %p473, %s31, 0
        %s475 = sadd.s32 %s474, %s472
        %s476 = smul.addr %s475, 8
        %s477 = scalar_lea.vmem %s2, %s476
        %p478 = pneg %p115
        %p479 = pneg %p112
        %p480 = scmp.lt.s32.totalorder %s30, 1
        %s481 = scalar_select %p480, %s30, 1
        %p482 = scmp.lt.s32.totalorder %s31, 0
        %s483 = scalar_select %p482, %s31, 0
        %s484 = sadd.s32 %s483, %s481
        %s485 = smul.addr %s484, 8
        %s486 = scalar_lea.vmem %s3, %s485
        %p487 = pneg %p143
        %p488 = pneg %p140
        %p489 = scmp.lt.s32.totalorder %s30, 1
        %s490 = scalar_select %p489, %s30, 1
        %p491 = scmp.lt.s32.totalorder %s31, 0
        %s492 = scalar_select %p491, %s31, 0
        %s493 = sadd.s32 %s492, %s490
        %s494 = smul.addr %s493, 8
        %s495 = scalar_lea.vmem %s4, %s494
        %p496 = pneg %p171
        %p497 = pneg %p168
        %p498 = scmp.lt.s32.totalorder %s30, 1
        %s499 = scalar_select %p498, %s30, 1
        %p500 = scmp.lt.s32.totalorder %s31, 0
        %s501 = scalar_select %p500, %s31, 0
        %s502 = sadd.s32 %s501, %s499
        %s503 = smul.addr %s502, 8
        %s504 = scalar_lea.vmem %s5, %s503
        %p505 = pneg %p199
        %p506 = pneg %p196
        %p507 = pneg %p220
        %p508 = pneg %p217
        %p509 = pneg %p241
        %p510 = pneg %p238
        %p511 = pneg %p262
        %p512 = pneg %p259
        %p513 = pneg %p283
        %p514 = pneg %p280
        %p515 = pneg %p304
        %p516 = pneg %p301
        %p517 = pneg %p325
        %p518 = pneg %p322
        %p519 = pneg %p353
        %p520 = pneg %p350
        %s521 = sand.u32 %s340, 1
        %s522 = scalar_lea.sflag [#allocation3], %s521
        %s523 = sand.u32 %s340, 1
        %s524 = smul.addr %s523, 8
        %s525 = scalar_lea.vmem [#allocation2], %s524
        %p526 = scmp.lt.s32.totalorder %s30, 1
        %s527 = scalar_select %p526, %s30, 1
        %s528 = smul.addr %s527, 3
        %s529 = smul.addr %s528, 4
        %s530 = scalar_lea.vmem %s0, %s529
        %p531 = scmp.lt.s32.totalorder %s30, 1
        %s532 = scalar_select %p531, %s30, 1
        %p533 = scmp.lt.s32.totalorder %s31, 0
        %s534 = scalar_select %p533, %s31, 0
        %s535 = sadd.s32 %s534, %s532
        %s536 = smul.addr %s535, 8
        %s537 = scalar_lea.vmem %s1, %s536
        %p538 = scmp.lt.s32.totalorder %s30, 1
        %s539 = scalar_select %p538, %s30, 1
        %p540 = scmp.lt.s32.totalorder %s31, 0
        %s541 = scalar_select %p540, %s31, 0
        %s542 = sadd.s32 %s541, %s539
        %s543 = smul.addr %s542, 8
        %s544 = scalar_lea.vmem %s2, %s543
        %p545 = scmp.lt.s32.totalorder %s30, 1
        %s546 = scalar_select %p545, %s30, 1
        %p547 = scmp.lt.s32.totalorder %s31, 0
        %s548 = scalar_select %p547, %s31, 0
        %s549 = sadd.s32 %s548, %s546
        %s550 = smul.addr %s549, 8
        %s551 = scalar_lea.vmem %s3, %s550
        %p552 = scmp.lt.s32.totalorder %s30, 1
        %s553 = scalar_select %p552, %s30, 1
        %p554 = scmp.lt.s32.totalorder %s31, 0
        %s555 = scalar_select %p554, %s31, 0
        %s556 = sadd.s32 %s555, %s553
        %s557 = smul.addr %s556, 8
        %s558 = scalar_lea.vmem %s4, %s557
        %p559 = scmp.lt.s32.totalorder %s30, 1
        %s560 = scalar_select %p559, %s30, 1
        %p561 = scmp.lt.s32.totalorder %s31, 0
        %s562 = scalar_select %p561, %s31, 0
        %s563 = sadd.s32 %s562, %s560
        %s564 = smul.addr %s563, 8
        %s565 = scalar_lea.vmem %s5, %s564
        %v567 = vld [vmem:[%s537] sm:$0xff]
        %v568 = vld [vmem:[%s6] sm:$0xff]
        %v569 = vld [vmem:[%s6 + $0x8] sm:$0xff]
        %v570 = vld [vmem:[%s6 + $0x10] sm:$0xff]
        %v571 = vld [vmem:[%s6 + $0x18] sm:$0xff]
        %vm572 = vcmask 261120
        %v574 = vsel %vm572, %v567, 0
        %576 = vmatprep.subr.mxu0 0.0
        %577 = vmatpush1.msra.mxu0 %v568
        %578 = vmatprep.subr.mxu0 0.0
        %579 = vmatpush1.msra.mxu0 %v569
        %580 = vmatprep.subr.mxu0 0.0
        %581 = vmatpush1.msra.mxu0 %v570
        %582 = vmatprep.subr.mxu0 0.0
        %583 = vmatpush1.msra.mxu0 %v571
        %584 = vmatprep.subr.mxu0 0.0
        %585 = vmatpush1.msra.mxu0 0.0
        %586 = vmatprep.subr.mxu0 0.0
        %587 = vmatpush1.msra.mxu0 0.0
        %588 = vmatprep.subr.mxu0 0.0
        %589 = vmatpush1.msra.mxu0 0.0
        %590 = vmatprep.subr.mxu0 0.0
        %591 = vmatpush1.msra.mxu0 0.0
        %592 = vmatprep.subr.mxu0 0.0
        %593 = vmatpush1.msra.mxu0 0.0
        %594 = vmatprep.subr.mxu0 0.0
        %595 = vmatpush1.msra.mxu0 0.0
        %596 = vmatprep.subr.mxu0 0.0
        %597 = vmatpush1.msra.mxu0 0.0
        %598 = vmatprep.subr.mxu0 0.0
        %599 = vmatpush1.msra.mxu0 0.0
        %600 = vmatprep.subr.mxu0 0.0
        %601 = vmatpush1.msra.mxu0 0.0
        %602 = vmatprep.subr.mxu0 0.0
        %603 = vmatpush1.msra.mxu0 0.0
        %604 = vmatprep.subr.mxu0 0.0
        %605 = vmatpush1.msra.mxu0 0.0
        %606 = vmatprep.subr.mxu0 0.0
        %607 = vmatpush1.msra.mxu0 0.0
        %608 = vmatprep.subr.mxu0 0.0
        %609 = vmatpush1.msra.mxu0 0.0
        %610 = vmatprep.subr.mxu0 0.0
        %611 = vmatpush1.msra.mxu0 0.0
        %612 = vmatprep.subr.mxu0 0.0
        %613 = vmatpush1.msra.mxu0 0.0
        %614 = vmatprep.subr.mxu0 0.0
        %615 = vmatpush1.msra.mxu0 0.0
        %616 = vmatprep.subr.mxu0 0.0
        %617 = vmatpush1.msra.mxu0 0.0
        %618 = vmatprep.subr.mxu0 0.0
        %619 = vmatpush1.msra.mxu0 0.0
        %620 = vmatprep.subr.mxu0 0.0
        %621 = vmatpush1.msra.mxu0 0.0
        %622 = vmatprep.subr.mxu0 0.0
        %623 = vmatpush1.msra.mxu0 0.0
        %624 = vmatprep.subr.mxu0 0.0
        %625 = vmatpush1.msra.mxu0 0.0
        %626 = vmatprep.subr.mxu0 0.0
        %627 = vmatpush1.msra.mxu0 0.0
        %628 = vmatprep.subr.mxu0 0.0
        %629 = vmatpush1.msra.mxu0 0.0
        %630 = vmatprep.subr.mxu0 0.0
        %631 = vmatpush1.msra.mxu0 0.0
        %632 = vmatprep.subr.mxu0 0.0
        %633 = vmatpush1.msra.mxu0 0.0
        %634 = vmatprep.subr.mxu0 0.0
        %635 = vmatpush1.msra.mxu0 0.0
        %636 = vmatprep.subr.mxu0 0.0
        %637 = vmatpush1.msra.mxu0 0.0
        %638 = vmatprep.subr.mxu0 0.0
        %639 = vmatpush1.msra.mxu0 0.0
        %640 = vmatprep.mubr.f32.mxu0 0.0
        %641 = vmatmul.mubr.f32.gmra.mrb[0].mxu0 %v574
        %v642 = vpop.f32.mrb[0].mxu0
        %v643 = vadd.f32 0.0, %v642
        %v644 = vpop.f32.mrb[0].mxu0
        %645 = vdwg.mxu0
        %v646 = vld [vmem:[%s544] sm:$0xff]
        %647 = vrot.lane.b32.xlu0 %v646, 127
        %v648 = vpop.permute.xlu0 %647
        %649 = vrot.lane.b32.xlu0 %v646, 126
        %v650 = vpop.permute.xlu0 %649
        %651 = vrot.lane.b32.xlu0 %v646, 125
        %v652 = vpop.permute.xlu0 %651
        %v653 = vlaneseq
        %v654 = vand.u32 %v653, 127
        %655 = vset.pattern.permute.xlu0 0
        %656 = vperm.xlu0 %655, %v646
        %v657 = vpop.permute.xlu0 %656
        %658 = vset.pattern.permute.xlu0 0
        %659 = vperm.xlu0 %658, %v648
        %v660 = vpop.permute.xlu0 %659
        %661 = vset.pattern.permute.xlu0 0
        %662 = vperm.xlu0 %661, %v650
        %v663 = vpop.permute.xlu0 %662
        %664 = vset.pattern.permute.xlu0 0
        %665 = vperm.xlu0 %664, %v652
        %v666 = vpop.permute.xlu0 %665
        %vm667 = vcmp.eq.s32.totalorder %v654, %v657
        %vm668 = vcmp.eq.s32.totalorder %v654, %v660
        %vm669 = vcmp.eq.s32.totalorder %v654, %v663
        %vm670 = vcmp.eq.s32.totalorder %v654, %v666
        %v671 = vsel %vm667, 1, 0
        %v672 = vsel %vm668, 1, 0
        %v673 = vsel %vm669, 1, 0
        %v674 = vsel %vm670, 1, 0
        %v675 = vcvt.s32.f32 %v671
        %v676 = vcvt.s32.f32 %v672
        %v677 = vcvt.s32.f32 %v673
        %v678 = vcvt.s32.f32 %v674
        %v679 = vpack.c.bf16 %v676, %v675
        %v680 = vpack.c.bf16 %v678, %v677
        %v681 = vld [vmem:[%s530] sm:$0xff]
        %v682 = vld [vmem:[%s530 + $0x8] sm:$0xf]
        %v685 = vunpack.c.l.b16 %v681
        %v686 = vunpack.c.h.b16 %v681
        %v687 = vunpack.c.l.b16 %v682
        %v688 = vpack.c.b16 %v685, %v685
        %v689 = vpack.c.b16 %v686, %v686
        %v690 = vpack.c.b16 %v687, %v687
        %vm691 = vcmask 64512
        %v693 = vsel %vm691, %v679, 0
        %v696 = vsel %vm691, %v680, 0
        %vm698 = vcmask 1043456
        %v700 = vsel %vm698, %v688, 0
        %v703 = vsel %vm698, %v689, 0
        %v706 = vsel %vm698, %v690, 0
        %708 = vmatprep.subr.bf16.mxu0 %v703
        %709 = vmatpush1.bf16.msra.mxu0 %v700
        %710 = vmatprep.subr.bf16.mxu0 0
        %711 = vmatpush1.bf16.msra.mxu0 0
        %712 = vmatprep.subr.bf16.mxu0 0
        %713 = vmatpush1.bf16.msra.mxu0 0
        %714 = vmatprep.subr.bf16.mxu0 0
        %715 = vmatpush1.bf16.msra.mxu0 0
        %716 = vmatprep.subr.bf16.mxu0 0
        %717 = vmatpush1.bf16.msra.mxu0 0
        %718 = vmatprep.subr.bf16.mxu0 0
        %719 = vmatpush1.bf16.msra.mxu0 0
        %720 = vmatprep.subr.bf16.mxu0 0
        %721 = vmatpush1.bf16.msra.mxu0 0
        %722 = vmatprep.subr.bf16.mxu0 0
        %723 = vmatpush1.bf16.msra.mxu0 0
        %724 = vmatprep.subr.bf16.mxu0 0
        %725 = vmatpush1.bf16.msra.mxu0 0
        %726 = vmatprep.subr.bf16.mxu0 0
        %727 = vmatpush1.bf16.msra.mxu0 0
        %728 = vmatprep.subr.bf16.mxu0 0
        %729 = vmatpush1.bf16.msra.mxu0 0
        %730 = vmatprep.subr.bf16.mxu0 0
        %731 = vmatpush1.bf16.msra.mxu0 0
        %732 = vmatprep.subr.bf16.mxu0 0
        %733 = vmatpush1.bf16.msra.mxu0 0
        %734 = vmatprep.subr.bf16.mxu0 0
        %735 = vmatpush1.bf16.msra.mxu0 0
        %736 = vmatprep.subr.bf16.mxu0 0
        %737 = vmatpush1.bf16.msra.mxu0 0
        %738 = vmatprep.subr.bf16.mxu0 0
        %739 = vmatpush1.bf16.msra.mxu0 0
        %740 = vmatprep.mubr.bf16.mxu0 0
        %741 = vmatmul.mubr.bf16.gmra.mrb[0].mxu0 %v693
        %v742 = vpop.f32.mrb[0].mxu0
        %v743 = vadd.f32 0.0, %v742
        %v744 = vpop.f32.mrb[0].mxu0
        %v745 = vadd.f32 0.0, %v744
        %v746 = vpop.f32.mrb[0].mxu0
        %v747 = vadd.f32 0.0, %v746
        %v748 = vpop.f32.mrb[0].mxu0
        %v749 = vadd.f32 0.0, %v748
        %750 = vmatprep.mubr.bf16.mxu0 0
        %751 = vmatmul.mubr.bf16.gmra.mrb[0].mxu0 %v696
        %v752 = vpop.f32.mrb[0].mxu0
        %v753 = vadd.f32 0.0, %v752
        %v754 = vpop.f32.mrb[0].mxu0
        %v755 = vadd.f32 0.0, %v754
        %v756 = vpop.f32.mrb[0].mxu0
        %v757 = vadd.f32 0.0, %v756
        %v758 = vpop.f32.mrb[0].mxu0
        %v759 = vadd.f32 0.0, %v758
        %760 = vdwg.mxu0
        %761 = vmatprep.subr.bf16.mxu0 0
        %762 = vmatpush1.bf16.msra.mxu0 %v706
        %763 = vmatprep.subr.bf16.mxu0 0
        %764 = vmatpush1.bf16.msra.mxu0 0
        %765 = vmatprep.subr.bf16.mxu0 0
        %766 = vmatpush1.bf16.msra.mxu0 0
        %767 = vmatprep.subr.bf16.mxu0 0
        %768 = vmatpush1.bf16.msra.mxu0 0
        %769 = vmatprep.subr.bf16.mxu0 0
        %770 = vmatpush1.bf16.msra.mxu0 0
        %771 = vmatprep.subr.bf16.mxu0 0
        %772 = vmatpush1.bf16.msra.mxu0 0
        %773 = vmatprep.subr.bf16.mxu0 0
        %774 = vmatpush1.bf16.msra.mxu0 0
        %775 = vmatprep.subr.bf16.mxu0 0
        %776 = vmatpush1.bf16.msra.mxu0 0
        %777 = vmatprep.subr.bf16.mxu0 0
        %778 = vmatpush1.bf16.msra.mxu0 0
        %779 = vmatprep.subr.bf16.mxu0 0
        %780 = vmatpush1.bf16.msra.mxu0 0
        %781 = vmatprep.subr.bf16.mxu0 0
        %782 = vmatpush1.bf16.msra.mxu0 0
        %783 = vmatprep.subr.bf16.mxu0 0
        %784 = vmatpush1.bf16.msra.mxu0 0
        %785 = vmatprep.subr.bf16.mxu0 0
        %786 = vmatpush1.bf16.msra.mxu0 0
        %787 = vmatprep.subr.bf16.mxu0 0
        %788 = vmatpush1.bf16.msra.mxu0 0
        %789 = vmatprep.subr.bf16.mxu0 0
        %790 = vmatpush1.bf16.msra.mxu0 0
        %791 = vmatprep.subr.bf16.mxu0 0
        %792 = vmatpush1.bf16.msra.mxu0 0
        %793 = vmatprep.mubr.bf16.mxu0 0
        %794 = vmatmul.mubr.bf16.gmra.mrb[0].mxu0 %v693
        %v795 = vpop.f32.mrb[0].mxu0
        %v796 = vadd.f32 0.0, %v795
        %v797 = vpop.f32.mrb[0].mxu0
        %v798 = vpop.f32.mrb[0].mxu0
        %v799 = vadd.f32 0.0, %v798
        %v800 = vpop.f32.mrb[0].mxu0
        %801 = vmatprep.mubr.bf16.mxu0 0
        %802 = vmatmul.mubr.bf16.gmra.mrb[0].mxu0 %v696
        %v803 = vpop.f32.mrb[0].mxu0
        %v804 = vadd.f32 0.0, %v803
        %v805 = vpop.f32.mrb[0].mxu0
        %v806 = vpop.f32.mrb[0].mxu0
        %v807 = vadd.f32 0.0, %v806
        %v808 = vpop.f32.mrb[0].mxu0
        %809 = vdwg.mxu0
        %v810 = vld [vmem:[%s551] sm:$0xff]
        %812 = vrot.lane.b32.xlu0 %v810, 119
        %v813 = vpop.permute.xlu0 %812
        %814 = vrot.lane.b32.xlu0 %v810, 110
        %v815 = vpop.permute.xlu0 %814
        %816 = vrot.lane.b32.xlu0 %v810, 101
        %v817 = vpop.permute.xlu0 %816
        %818 = vset.pattern.permute.xlu0 0
        %819 = vperm.xlu0 %818, %v810
        %v820 = vpop.permute.xlu0 %819
        %822 = vset.pattern.permute.xlu0 0
        %823 = vperm.xlu0 %822, %v813
        %v824 = vpop.permute.xlu0 %823
        %826 = vset.pattern.permute.xlu0 0
        %827 = vperm.xlu0 %826, %v815
        %v828 = vpop.permute.xlu0 %827
        %830 = vset.pattern.permute.xlu0 0
        %831 = vperm.xlu0 %830, %v817
        %v832 = vpop.permute.xlu0 %831
        %v834 = vmul.f32 %v820, %v745
        %v835 = vmul.f32 %v824, %v749
        %v836 = vmul.f32 %v828, %v755
        %v837 = vmul.f32 %v832, %v759
        %838 = vset.pattern.permute.xlu0 1
        %839 = vperm.xlu0 %838, %v810
        %v840 = vpop.permute.xlu0 %839
        %842 = vset.pattern.permute.xlu0 1
        %843 = vperm.xlu0 %842, %v813
        %v844 = vpop.permute.xlu0 %843
        %846 = vset.pattern.permute.xlu0 1
        %847 = vperm.xlu0 %846, %v815
        %v848 = vpop.permute.xlu0 %847
        %850 = vset.pattern.permute.xlu0 1
        %851 = vperm.xlu0 %850, %v817
        %v852 = vpop.permute.xlu0 %851
        %v854 = vmul.f32 %v840, %v745
        %v855 = vmul.f32 %v844, %v749
        %v856 = vmul.f32 %v848, %v755
        %v857 = vmul.f32 %v852, %v759
        %862 = vrot.lane.b32.xlu0 %v854, 80
        %v863 = vpop.permute.xlu0 %862
        %864 = vrot.lane.b32.xlu0 %v855, 80
        %v865 = vpop.permute.xlu0 %864
        %866 = vrot.lane.b32.xlu0 %v856, 80
        %v867 = vpop.permute.xlu0 %866
        %868 = vrot.lane.b32.xlu0 %v857, 80
        %v869 = vpop.permute.xlu0 %868
        %v874 = vadd.f32 %v834, %v863
        %v875 = vadd.f32 %v835, %v865
        %v876 = vadd.f32 %v836, %v867
        %v877 = vadd.f32 %v837, %v869
        %878 = vset.pattern.permute.xlu0 2
        %879 = vperm.xlu0 %878, %v810
        %v880 = vpop.permute.xlu0 %879
        %882 = vset.pattern.permute.xlu0 2
        %883 = vperm.xlu0 %882, %v813
        %v884 = vpop.permute.xlu0 %883
        %886 = vset.pattern.permute.xlu0 2
        %887 = vperm.xlu0 %886, %v815
        %v888 = vpop.permute.xlu0 %887
        %890 = vset.pattern.permute.xlu0 2
        %891 = vperm.xlu0 %890, %v817
        %v892 = vpop.permute.xlu0 %891
        %v894 = vmul.f32 %v880, %v745
        %v895 = vmul.f32 %v880, %v796
        %v896 = vmul.f32 %v884, %v749
        %v897 = vmul.f32 %v884, %v799
        %v898 = vmul.f32 %v888, %v755
        %v899 = vmul.f32 %v888, %v804
        %v900 = vmul.f32 %v892, %v759
        %v901 = vmul.f32 %v892, %v807
        %910 = vrot.lane.b32.xlu0 %v894, 32
        %v911 = vpop.permute.xlu0 %910
        %912 = vrot.lane.b32.xlu0 %v895, 32
        %v913 = vpop.permute.xlu0 %912
        %914 = vrot.lane.b32.xlu0 %v896, 32
        %v915 = vpop.permute.xlu0 %914
        %916 = vrot.lane.b32.xlu0 %v897, 32
        %v917 = vpop.permute.xlu0 %916
        %918 = vrot.lane.b32.xlu0 %v898, 32
        %v919 = vpop.permute.xlu0 %918
        %920 = vrot.lane.b32.xlu0 %v899, 32
        %v921 = vpop.permute.xlu0 %920
        %922 = vrot.lane.b32.xlu0 %v900, 32
        %v923 = vpop.permute.xlu0 %922
        %924 = vrot.lane.b32.xlu0 %v901, 32
        %v925 = vpop.permute.xlu0 %924
        %v926 = vsel %vm572, %v911, %v913
        %v927 = vsel %vm572, %v915, %v917
        %v928 = vsel %vm572, %v919, %v921
        %v929 = vsel %vm572, %v923, %v925
        %v934 = vadd.f32 %v874, %v926
        %v935 = vadd.f32 %v875, %v927
        %v936 = vadd.f32 %v876, %v928
        %v937 = vadd.f32 %v877, %v929
        %938 = vset.pattern.permute.xlu0 3
        %939 = vperm.xlu0 %938, %v810
        %v940 = vpop.permute.xlu0 %939
        %942 = vset.pattern.permute.xlu0 3
        %943 = vperm.xlu0 %942, %v813
        %v944 = vpop.permute.xlu0 %943
        %946 = vset.pattern.permute.xlu0 3
        %947 = vperm.xlu0 %946, %v815
        %v948 = vpop.permute.xlu0 %947
        %950 = vset.pattern.permute.xlu0 3
        %951 = vperm.xlu0 %950, %v817
        %v952 = vpop.permute.xlu0 %951
        %v954 = vmul.f32 %v940, %v745
        %v955 = vmul.f32 %v944, %v749
        %v956 = vmul.f32 %v948, %v755
        %v957 = vmul.f32 %v952, %v759
        %958 = vset.pattern.permute.xlu0 4
        %959 = vperm.xlu0 %958, %v810
        %v960 = vpop.permute.xlu0 %959
        %962 = vset.pattern.permute.xlu0 4
        %963 = vperm.xlu0 %962, %v813
        %v964 = vpop.permute.xlu0 %963
        %966 = vset.pattern.permute.xlu0 4
        %967 = vperm.xlu0 %966, %v815
        %v968 = vpop.permute.xlu0 %967
        %970 = vset.pattern.permute.xlu0 4
        %971 = vperm.xlu0 %970, %v817
        %v972 = vpop.permute.xlu0 %971
        %v974 = vmul.f32 %v960, %v745
        %v975 = vmul.f32 %v964, %v749
        %v976 = vmul.f32 %v968, %v755
        %v977 = vmul.f32 %v972, %v759
        %982 = vrot.lane.b32.xlu0 %v974, 80
        %v983 = vpop.permute.xlu0 %982
        %984 = vrot.lane.b32.xlu0 %v975, 80
        %v985 = vpop.permute.xlu0 %984
        %986 = vrot.lane.b32.xlu0 %v976, 80
        %v987 = vpop.permute.xlu0 %986
        %988 = vrot.lane.b32.xlu0 %v977, 80
        %v989 = vpop.permute.xlu0 %988
        %v994 = vadd.f32 %v954, %v983
        %v995 = vadd.f32 %v955, %v985
        %v996 = vadd.f32 %v956, %v987
        %v997 = vadd.f32 %v957, %v989
        %998 = vset.pattern.permute.xlu0 5
        %999 = vperm.xlu0 %998, %v810
        %v1000 = vpop.permute.xlu0 %999
        %1002 = vset.pattern.permute.xlu0 5
        %1003 = vperm.xlu0 %1002, %v813
        %v1004 = vpop.permute.xlu0 %1003
        %1006 = vset.pattern.permute.xlu0 5
        %1007 = vperm.xlu0 %1006, %v815
        %v1008 = vpop.permute.xlu0 %1007
        %1010 = vset.pattern.permute.xlu0 5
        %1011 = vperm.xlu0 %1010, %v817
        %v1012 = vpop.permute.xlu0 %1011
        %v1014 = vmul.f32 %v1000, %v745
        %v1015 = vmul.f32 %v1000, %v796
        %v1016 = vmul.f32 %v1004, %v749
        %v1017 = vmul.f32 %v1004, %v799
        %v1018 = vmul.f32 %v1008, %v755
        %v1019 = vmul.f32 %v1008, %v804
        %v1020 = vmul.f32 %v1012, %v759
        %v1021 = vmul.f32 %v1012, %v807
        %1030 = vrot.lane.b32.xlu0 %v1014, 32
        %v1031 = vpop.permute.xlu0 %1030
        %1032 = vrot.lane.b32.xlu0 %v1015, 32
        %v1033 = vpop.permute.xlu0 %1032
        %1034 = vrot.lane.b32.xlu0 %v1016, 32
        %v1035 = vpop.permute.xlu0 %1034
        %1036 = vrot.lane.b32.xlu0 %v1017, 32
        %v1037 = vpop.permute.xlu0 %1036
        %1038 = vrot.lane.b32.xlu0 %v1018, 32
        %v1039 = vpop.permute.xlu0 %1038
        %1040 = vrot.lane.b32.xlu0 %v1019, 32
        %v1041 = vpop.permute.xlu0 %1040
        %1042 = vrot.lane.b32.xlu0 %v1020, 32
        %v1043 = vpop.permute.xlu0 %1042
        %1044 = vrot.lane.b32.xlu0 %v1021, 32
        %v1045 = vpop.permute.xlu0 %1044
        %v1046 = vsel %vm572, %v1031, %v1033
        %v1047 = vsel %vm572, %v1035, %v1037
        %v1048 = vsel %vm572, %v1039, %v1041
        %v1049 = vsel %vm572, %v1043, %v1045
        %v1054 = vadd.f32 %v994, %v1046
        %v1055 = vadd.f32 %v995, %v1047
        %v1056 = vadd.f32 %v996, %v1048
        %v1057 = vadd.f32 %v997, %v1049
        %1058 = vset.pattern.permute.xlu0 6
        %1059 = vperm.xlu0 %1058, %v810
        %v1060 = vpop.permute.xlu0 %1059
        %1062 = vset.pattern.permute.xlu0 6
        %1063 = vperm.xlu0 %1062, %v813
        %v1064 = vpop.permute.xlu0 %1063
        %1066 = vset.pattern.permute.xlu0 6
        %1067 = vperm.xlu0 %1066, %v815
        %v1068 = vpop.permute.xlu0 %1067
        %1070 = vset.pattern.permute.xlu0 6
        %1071 = vperm.xlu0 %1070, %v817
        %v1072 = vpop.permute.xlu0 %1071
        %v1074 = vmul.f32 %v1060, %v745
        %v1075 = vmul.f32 %v1064, %v749
        %v1076 = vmul.f32 %v1068, %v755
        %v1077 = vmul.f32 %v1072, %v759
        %1078 = vset.pattern.permute.xlu0 7
        %1079 = vperm.xlu0 %1078, %v810
        %v1080 = vpop.permute.xlu0 %1079
        %1082 = vset.pattern.permute.xlu0 7
        %1083 = vperm.xlu0 %1082, %v813
        %v1084 = vpop.permute.xlu0 %1083
        %1086 = vset.pattern.permute.xlu0 7
        %1087 = vperm.xlu0 %1086, %v815
        %v1088 = vpop.permute.xlu0 %1087
        %1090 = vset.pattern.permute.xlu0 7
        %1091 = vperm.xlu0 %1090, %v817
        %v1092 = vpop.permute.xlu0 %1091
        %v1094 = vmul.f32 %v1080, %v745
        %v1095 = vmul.f32 %v1084, %v749
        %v1096 = vmul.f32 %v1088, %v755
        %v1097 = vmul.f32 %v1092, %v759
        %1102 = vrot.lane.b32.xlu0 %v1094, 80
        %v1103 = vpop.permute.xlu0 %1102
        %1104 = vrot.lane.b32.xlu0 %v1095, 80
        %v1105 = vpop.permute.xlu0 %1104
        %1106 = vrot.lane.b32.xlu0 %v1096, 80
        %v1107 = vpop.permute.xlu0 %1106
        %1108 = vrot.lane.b32.xlu0 %v1097, 80
        %v1109 = vpop.permute.xlu0 %1108
        %v1114 = vadd.f32 %v1074, %v1103
        %v1115 = vadd.f32 %v1075, %v1105
        %v1116 = vadd.f32 %v1076, %v1107
        %v1117 = vadd.f32 %v1077, %v1109
        %1118 = vset.pattern.permute.xlu0 8
        %1119 = vperm.xlu0 %1118, %v810
        %v1120 = vpop.permute.xlu0 %1119
        %1122 = vset.pattern.permute.xlu0 8
        %1123 = vperm.xlu0 %1122, %v813
        %v1124 = vpop.permute.xlu0 %1123
        %1126 = vset.pattern.permute.xlu0 8
        %1127 = vperm.xlu0 %1126, %v815
        %v1128 = vpop.permute.xlu0 %1127
        %1130 = vset.pattern.permute.xlu0 8
        %1131 = vperm.xlu0 %1130, %v817
        %v1132 = vpop.permute.xlu0 %1131
        %v1134 = vmul.f32 %v1120, %v745
        %v1135 = vmul.f32 %v1120, %v796
        %v1136 = vmul.f32 %v1124, %v749
        %v1137 = vmul.f32 %v1124, %v799
        %v1138 = vmul.f32 %v1128, %v755
        %v1139 = vmul.f32 %v1128, %v804
        %v1140 = vmul.f32 %v1132, %v759
        %v1141 = vmul.f32 %v1132, %v807
        %1150 = vrot.lane.b32.xlu0 %v1134, 32
        %v1151 = vpop.permute.xlu0 %1150
        %1152 = vrot.lane.b32.xlu0 %v1135, 32
        %v1153 = vpop.permute.xlu0 %1152
        %1154 = vrot.lane.b32.xlu0 %v1136, 32
        %v1155 = vpop.permute.xlu0 %1154
        %1156 = vrot.lane.b32.xlu0 %v1137, 32
        %v1157 = vpop.permute.xlu0 %1156
        %1158 = vrot.lane.b32.xlu0 %v1138, 32
        %v1159 = vpop.permute.xlu0 %1158
        %1160 = vrot.lane.b32.xlu0 %v1139, 32
        %v1161 = vpop.permute.xlu0 %1160
        %1162 = vrot.lane.b32.xlu0 %v1140, 32
        %v1163 = vpop.permute.xlu0 %1162
        %1164 = vrot.lane.b32.xlu0 %v1141, 32
        %v1165 = vpop.permute.xlu0 %1164
        %v1166 = vsel %vm572, %v1151, %v1153
        %v1167 = vsel %vm572, %v1155, %v1157
        %v1168 = vsel %vm572, %v1159, %v1161
        %v1169 = vsel %vm572, %v1163, %v1165
        %v1174 = vadd.f32 %v1114, %v1166
        %v1175 = vadd.f32 %v1115, %v1167
        %v1176 = vadd.f32 %v1116, %v1168
        %v1177 = vadd.f32 %v1117, %v1169
        %v1178 = vmul.f32 %v643, %v743
        %v1179 = vmul.f32 %v643, %v747
        %v1180 = vmul.f32 %v643, %v753
        %v1181 = vmul.f32 %v643, %v757
        %1186 = vrot.lane.b32.xlu0 %v934, 64
        %v1187 = vpop.permute.xlu0 %1186
        %1188 = vrot.lane.b32.xlu0 %v935, 64
        %v1189 = vpop.permute.xlu0 %1188
        %1190 = vrot.lane.b32.xlu0 %v936, 64
        %v1191 = vpop.permute.xlu0 %1190
        %1192 = vrot.lane.b32.xlu0 %v937, 64
        %v1193 = vpop.permute.xlu0 %1192
        %v1198 = vsub.f32 %v643, %v1187
        %v1199 = vsub.f32 %v643, %v1189
        %v1200 = vsub.f32 %v643, %v1191
        %v1201 = vsub.f32 %v643, %v1193
        %1206 = vrot.lane.b32.xlu0 %v1054, 80
        %v1207 = vpop.permute.xlu0 %1206
        %1208 = vrot.lane.b32.xlu0 %v1055, 80
        %v1209 = vpop.permute.xlu0 %1208
        %1210 = vrot.lane.b32.xlu0 %v1056, 80
        %v1211 = vpop.permute.xlu0 %1210
        %1212 = vrot.lane.b32.xlu0 %v1057, 80
        %v1213 = vpop.permute.xlu0 %1212
        %v1218 = vsub.f32 %v643, %v1207
        %v1219 = vsub.f32 %v643, %v1209
        %v1220 = vsub.f32 %v643, %v1211
        %v1221 = vsub.f32 %v643, %v1213
        %1226 = vrot.lane.b32.xlu0 %v1174, 96
        %v1227 = vpop.permute.xlu0 %1226
        %1228 = vrot.lane.b32.xlu0 %v1175, 96
        %v1229 = vpop.permute.xlu0 %1228
        %1230 = vrot.lane.b32.xlu0 %v1176, 96
        %v1231 = vpop.permute.xlu0 %1230
        %1232 = vrot.lane.b32.xlu0 %v1177, 96
        %v1233 = vpop.permute.xlu0 %1232
        %v1238 = vsub.f32 %v643, %v1227
        %v1239 = vsub.f32 %v643, %v1229
        %v1240 = vsub.f32 %v643, %v1231
        %v1241 = vsub.f32 %v643, %v1233
        %v1242 = vmul.f32 %v1198, %v1198
        %v1243 = vmul.f32 %v1199, %v1199
        %v1244 = vmul.f32 %v1200, %v1200
        %v1245 = vmul.f32 %v1201, %v1201
        %v1246 = vmul.f32 %v1218, %v1218
        %v1247 = vmul.f32 %v1219, %v1219
        %v1248 = vmul.f32 %v1220, %v1220
        %v1249 = vmul.f32 %v1221, %v1221
        %1254 = vrot.lane.b32.xlu0 %v1246, 112
        %v1255 = vpop.permute.xlu0 %1254
        %1256 = vrot.lane.b32.xlu0 %v1247, 112
        %v1257 = vpop.permute.xlu0 %1256
        %1258 = vrot.lane.b32.xlu0 %v1248, 112
        %v1259 = vpop.permute.xlu0 %1258
        %1260 = vrot.lane.b32.xlu0 %v1249, 112
        %v1261 = vpop.permute.xlu0 %1260
        %v1266 = vadd.f32 %v1242, %v1255
        %v1267 = vadd.f32 %v1243, %v1257
        %v1268 = vadd.f32 %v1244, %v1259
        %v1269 = vadd.f32 %v1245, %v1261
        %v1270 = vmul.f32 %v1238, %v1238
        %v1271 = vmul.f32 %v1239, %v1239
        %v1272 = vmul.f32 %v1240, %v1240
        %v1273 = vmul.f32 %v1241, %v1241
        %1278 = vrot.lane.b32.xlu0 %v1270, 96
        %v1279 = vpop.permute.xlu0 %1278
        %1280 = vrot.lane.b32.xlu0 %v1271, 96
        %v1281 = vpop.permute.xlu0 %1280
        %1282 = vrot.lane.b32.xlu0 %v1272, 96
        %v1283 = vpop.permute.xlu0 %1282
        %1284 = vrot.lane.b32.xlu0 %v1273, 96
        %v1285 = vpop.permute.xlu0 %1284
        %v1290 = vadd.f32 %v1266, %v1279
        %v1291 = vadd.f32 %v1267, %v1281
        %v1292 = vadd.f32 %v1268, %v1283
        %v1293 = vadd.f32 %v1269, %v1285
        %vm1294 = vcmask 523264
        %v1295 = vsel %vm1294, %v1178, %v1290
        %v1296 = vsel %vm1294, %v1179, %v1291
        %v1297 = vsel %vm1294, %v1180, %v1292
        %v1298 = vsel %vm1294, %v1181, %v1293
        %v1299 = vld [vmem:[%s7] sm:$0xff]
        %v1300 = vld [vmem:[%s7 + $0x8] sm:$0xff]
        %v1301 = vld [vmem:[%s7 + $0x10] sm:$0xff]
        %v1302 = vld [vmem:[%s7 + $0x18] sm:$0xff]
        %v1303 = vld [vmem:[%s7 + $0x20] sm:$0xff]
        %v1304 = vld [vmem:[%s7 + $0x28] sm:$0xff]
        %v1305 = vld [vmem:[%s7 + $0x30] sm:$0xff]
        %v1306 = vld [vmem:[%s7 + $0x38] sm:$0xff]
        %v1307 = vld [vmem:[%s7 + $0x40] sm:$0xff]
        %v1308 = vld [vmem:[%s7 + $0x48] sm:$0xff]
        %vm1309 = vcmask 654336
        %v1311 = vsel %vm1309, %v1295, 0
        %v1314 = vsel %vm1309, %v1296, 0
        %v1317 = vsel %vm1309, %v1297, 0
        %v1320 = vsel %vm1309, %v1298, 0
        %1322 = vmatprep.subr.mxu0 0.0
        %1323 = vmatpush1.msra.mxu0 %v1299
        %1324 = vmatprep.subr.mxu0 0.0
        %1325 = vmatpush1.msra.mxu0 %v1300
        %1326 = vmatprep.subr.mxu0 0.0
        %1327 = vmatpush1.msra.mxu0 %v1301
        %1328 = vmatprep.subr.mxu0 0.0
        %1329 = vmatpush1.msra.mxu0 %v1302
        %1330 = vmatprep.subr.mxu0 0.0
        %1331 = vmatpush1.msra.mxu0 %v1303
        %1332 = vmatprep.subr.mxu0 0.0
        %1333 = vmatpush1.msra.mxu0 %v1304
        %1334 = vmatprep.subr.mxu0 0.0
        %1335 = vmatpush1.msra.mxu0 %v1305
        %1336 = vmatprep.subr.mxu0 0.0
        %1337 = vmatpush1.msra.mxu0 %v1306
        %1338 = vmatprep.subr.mxu0 0.0
        %1339 = vmatpush1.msra.mxu0 %v1307
        %1340 = vmatprep.subr.mxu0 0.0
        %1341 = vmatpush1.msra.mxu0 %v1308
        %1342 = vmatprep.subr.mxu0 0.0
        %1343 = vmatpush1.msra.mxu0 0.0
        %1344 = vmatprep.subr.mxu0 0.0
        %1345 = vmatpush1.msra.mxu0 0.0
        %1346 = vmatprep.subr.mxu0 0.0
        %1347 = vmatpush1.msra.mxu0 0.0
        %1348 = vmatprep.subr.mxu0 0.0
        %1349 = vmatpush1.msra.mxu0 0.0
        %1350 = vmatprep.subr.mxu0 0.0
        %1351 = vmatpush1.msra.mxu0 0.0
        %1352 = vmatprep.subr.mxu0 0.0
        %1353 = vmatpush1.msra.mxu0 0.0
        %1354 = vmatprep.subr.mxu0 0.0
        %1355 = vmatpush1.msra.mxu0 0.0
        %1356 = vmatprep.subr.mxu0 0.0
        %1357 = vmatpush1.msra.mxu0 0.0
        %1358 = vmatprep.subr.mxu0 0.0
        %1359 = vmatpush1.msra.mxu0 0.0
        %1360 = vmatprep.subr.mxu0 0.0
        %1361 = vmatpush1.msra.mxu0 0.0
        %1362 = vmatprep.subr.mxu0 0.0
        %1363 = vmatpush1.msra.mxu0 0.0
        %1364 = vmatprep.subr.mxu0 0.0
        %1365 = vmatpush1.msra.mxu0 0.0
        %1366 = vmatprep.subr.mxu0 0.0
        %1367 = vmatpush1.msra.mxu0 0.0
        %1368 = vmatprep.subr.mxu0 0.0
        %1369 = vmatpush1.msra.mxu0 0.0
        %1370 = vmatprep.subr.mxu0 0.0
        %1371 = vmatpush1.msra.mxu0 0.0
        %1372 = vmatprep.subr.mxu0 0.0
        %1373 = vmatpush1.msra.mxu0 0.0
        %1374 = vmatprep.subr.mxu0 0.0
        %1375 = vmatpush1.msra.mxu0 0.0
        %1376 = vmatprep.subr.mxu0 0.0
        %1377 = vmatpush1.msra.mxu0 0.0
        %1378 = vmatprep.subr.mxu0 0.0
        %1379 = vmatpush1.msra.mxu0 0.0
        %1380 = vmatprep.subr.mxu0 0.0
        %1381 = vmatpush1.msra.mxu0 0.0
        %1382 = vmatprep.subr.mxu0 0.0
        %1383 = vmatpush1.msra.mxu0 0.0
        %1384 = vmatprep.subr.mxu0 0.0
        %1385 = vmatpush1.msra.mxu0 0.0
        %1386 = vmatprep.mubr.f32.mxu0 0.0
        %1387 = vmatmul.mubr.f32.gmra.mrb[0].mxu0 %v1311
        %v1388 = vpop.f32.mrb[0].mxu0
        %v1389 = vadd.f32 0.0, %v1388
        %v1390 = vpop.f32.mrb[0].mxu0
        %1391 = vmatprep.mubr.f32.mxu0 0.0
        %1392 = vmatmul.mubr.f32.gmra.mrb[0].mxu0 %v1314
        %v1393 = vpop.f32.mrb[0].mxu0
        %v1394 = vadd.f32 0.0, %v1393
        %v1395 = vpop.f32.mrb[0].mxu0
        %1396 = vmatprep.mubr.f32.mxu0 0.0
        %1397 = vmatmul.mubr.f32.gmra.mrb[0].mxu0 %v1317
        %v1398 = vpop.f32.mrb[0].mxu0
        %v1399 = vadd.f32 0.0, %v1398
        %v1400 = vpop.f32.mrb[0].mxu0
        %1401 = vmatprep.mubr.f32.mxu0 0.0
        %1402 = vmatmul.mubr.f32.gmra.mrb[0].mxu0 %v1320
        %v1403 = vpop.f32.mrb[0].mxu0
        %v1404 = vadd.f32 0.0, %v1403
        %v1405 = vpop.f32.mrb[0].mxu0
        %1406 = vdwg.mxu0
        %v1407 = vld [vmem:[%s565] sm:$0xff]
        %v1408 = vsub.f32 %v1407, 1.0
        %v1409 = vmul.f32 %v1408, 1e+08
        %v1410 = vld [vmem:[%s558] sm:$0xff]
        %1412 = vrot.lane.b32.xlu0 %v1409, 32
        %v1413 = vpop.permute.xlu0 %1412
        %v1415 = vsel %vm572, %v1410, %v1413
        %v1416 = vld [vmem:[%s8] sm:$0xff]
        %v1417 = vld [vmem:[%s8 + $0x8] sm:$0xff]
        %v1418 = vld [vmem:[%s8 + $0x10] sm:$0xff]
        %v1419 = vld [vmem:[%s8 + $0x18] sm:$0xff]
        %v1420 = vld [vmem:[%s8 + $0x20] sm:$0xf]
        %vm1421 = vcmask 293888
        %v1423 = vsel %vm1421, %v1415, 0
        %v1426 = vsel %vm698, %v1420, 0
        %1428 = vmatprep.subr.mxu0 0.0
        %1429 = vmatpush1.msra.mxu0 %v1416
        %1430 = vmatprep.subr.mxu0 0.0
        %1431 = vmatpush1.msra.mxu0 %v1417
        %1432 = vmatprep.subr.mxu0 0.0
        %1433 = vmatpush1.msra.mxu0 %v1418
        %1434 = vmatprep.subr.mxu0 0.0
        %1435 = vmatpush1.msra.mxu0 %v1419
        %1436 = vmatprep.subr.mxu0 0.0
        %1437 = vmatpush1.msra.mxu0 %v1426
        %1438 = vmatprep.subr.mxu0 0.0
        %1439 = vmatpush1.msra.mxu0 0.0
        %1440 = vmatprep.subr.mxu0 0.0
        %1441 = vmatpush1.msra.mxu0 0.0
        %1442 = vmatprep.subr.mxu0 0.0
        %1443 = vmatpush1.msra.mxu0 0.0
        %1444 = vmatprep.subr.mxu0 0.0
        %1445 = vmatpush1.msra.mxu0 0.0
        %1446 = vmatprep.subr.mxu0 0.0
        %1447 = vmatpush1.msra.mxu0 0.0
        %1448 = vmatprep.subr.mxu0 0.0
        %1449 = vmatpush1.msra.mxu0 0.0
        %1450 = vmatprep.subr.mxu0 0.0
        %1451 = vmatpush1.msra.mxu0 0.0
        %1452 = vmatprep.subr.mxu0 0.0
        %1453 = vmatpush1.msra.mxu0 0.0
        %1454 = vmatprep.subr.mxu0 0.0
        %1455 = vmatpush1.msra.mxu0 0.0
        %1456 = vmatprep.subr.mxu0 0.0
        %1457 = vmatpush1.msra.mxu0 0.0
        %1458 = vmatprep.subr.mxu0 0.0
        %1459 = vmatpush1.msra.mxu0 0.0
        %1460 = vmatprep.subr.mxu0 0.0
        %1461 = vmatpush1.msra.mxu0 0.0
        %1462 = vmatprep.subr.mxu0 0.0
        %1463 = vmatpush1.msra.mxu0 0.0
        %1464 = vmatprep.subr.mxu0 0.0
        %1465 = vmatpush1.msra.mxu0 0.0
        %1466 = vmatprep.subr.mxu0 0.0
        %1467 = vmatpush1.msra.mxu0 0.0
        %1468 = vmatprep.subr.mxu0 0.0
        %1469 = vmatpush1.msra.mxu0 0.0
        %1470 = vmatprep.subr.mxu0 0.0
        %1471 = vmatpush1.msra.mxu0 0.0
        %1472 = vmatprep.subr.mxu0 0.0
        %1473 = vmatpush1.msra.mxu0 0.0
        %1474 = vmatprep.subr.mxu0 0.0
        %1475 = vmatpush1.msra.mxu0 0.0
        %1476 = vmatprep.subr.mxu0 0.0
        %1477 = vmatpush1.msra.mxu0 0.0
        %1478 = vmatprep.subr.mxu0 0.0
        %1479 = vmatpush1.msra.mxu0 0.0
        %1480 = vmatprep.subr.mxu0 0.0
        %1481 = vmatpush1.msra.mxu0 0.0
        %1482 = vmatprep.subr.mxu0 0.0
        %1483 = vmatpush1.msra.mxu0 0.0
        %1484 = vmatprep.subr.mxu0 0.0
        %1485 = vmatpush1.msra.mxu0 0.0
        %1486 = vmatprep.subr.mxu0 0.0
        %1487 = vmatpush1.msra.mxu0 0.0
        %1488 = vmatprep.subr.mxu0 0.0
        %1489 = vmatpush1.msra.mxu0 0.0
        %1490 = vmatprep.subr.mxu0 0.0
        %1491 = vmatpush1.msra.mxu0 0.0
        %1492 = vmatprep.mubr.f32.mxu0 0.0
        %1493 = vmatmul.mubr.f32.gmra.mrb[0].mxu0 %v1423
        %v1494 = vpop.f32.mrb[0].mxu0
        %v1495 = vadd.f32 0.0, %v1494
        %v1496 = vpop.f32.mrb[0].mxu0
        %1497 = vdwg.mxu0
        %1499 = vrot.lane.b32.xlu0 %v1394, 4
        %v1500 = vpop.permute.xlu0 %1499
        %1503 = vrot.lane.b32.xlu0 %v1399, 8
        %v1504 = vpop.permute.xlu0 %1503
        %1507 = vrot.lane.b32.xlu0 %v1404, 12
        %v1508 = vpop.permute.xlu0 %1507
        %vm1510 = vcmask 31744
        %v1511 = vsel %vm1510, %v1389, %v1500
        %v1512 = vsel %vm691, %v1511, %v1504
        %vm1513 = vcmask 97280
        %v1514 = vsel %vm1513, %v1512, %v1508
        %v1515 = vadd.f32 %v1514, %v1495
        %1517 = vrot.lane.b32.xlu0 %v1515, 124
        %v1518 = vpop.permute.xlu0 %1517
        %v1520 = vmax.f32 %v1515, %v1518
        %1521 = vrot.lane.b32.xlu0 %v1515, 120
        %v1522 = vpop.permute.xlu0 %1521
        %v1524 = vmax.f32 %v1520, %v1522
        %1525 = vrot.lane.b32.xlu0 %v1515, 116
        %v1526 = vpop.permute.xlu0 %1525
        %v1528 = vmax.f32 %v1524, %v1526
        %1530 = vrot.lane.b32.xlu0 %v1528, 4
        %v1531 = vpop.permute.xlu0 %1530
        %1533 = vrot.lane.b32.xlu0 %v1528, 8
        %v1534 = vpop.permute.xlu0 %1533
        %1536 = vrot.lane.b32.xlu0 %v1528, 12
        %v1537 = vpop.permute.xlu0 %1536
        %v1539 = vsel %vm1510, %v1528, %v1531
        %v1540 = vsel %vm691, %v1539, %v1534
        %v1541 = vsel %vm1513, %v1540, %v1537
        %v1542 = vsub.f32 %v1515, %v1541
        %v1543 = vmul.f32 %v1542, 1.442695
        %v1544 = vpow.pop %v1543
        %1546 = vrot.lane.b32.xlu0 %v1544, 124
        %v1547 = vpop.permute.xlu0 %1546
        %v1549 = vadd.f32 %v1544, %v1547
        %1550 = vrot.lane.b32.xlu0 %v1544, 120
        %v1551 = vpop.permute.xlu0 %1550
        %v1553 = vadd.f32 %v1549, %v1551
        %1554 = vrot.lane.b32.xlu0 %v1544, 116
        %v1555 = vpop.permute.xlu0 %1554
        %v1557 = vadd.f32 %v1553, %v1555
        %v1558 = vrcp.pop %v1557
        %1560 = vrot.lane.b32.xlu0 %v1558, 4
        %v1561 = vpop.permute.xlu0 %1560
        %1563 = vrot.lane.b32.xlu0 %v1558, 8
        %v1564 = vpop.permute.xlu0 %1563
        %1566 = vrot.lane.b32.xlu0 %v1558, 12
        %v1567 = vpop.permute.xlu0 %1566
        %v1569 = vsel %vm1510, %v1558, %v1561
        %v1570 = vsel %vm691, %v1569, %v1564
        %v1571 = vsel %vm1513, %v1570, %v1567
        %v1572 = vmul.f32 %v1544, %v1571
        %v1573 = vld [vmem:[%s9] sm:$0xf]
        %v1575 = vsel %vm1510, %v1572, 0
        %v1578 = vsel %vm698, %v1573, 0
        %1580 = vmatprep.subr.mxu0 0.0
        %1581 = vmatpush1.msra.mxu0 %v1578
        %1582 = vmatprep.subr.mxu0 0.0
        %1583 = vmatpush1.msra.mxu0 0.0
        %1584 = vmatprep.subr.mxu0 0.0
        %1585 = vmatpush1.msra.mxu0 0.0
        %1586 = vmatprep.subr.mxu0 0.0
        %1587 = vmatpush1.msra.mxu0 0.0
        %1588 = vmatprep.subr.mxu0 0.0
        %1589 = vmatpush1.msra.mxu0 0.0
        %1590 = vmatprep.subr.mxu0 0.0
        %1591 = vmatpush1.msra.mxu0 0.0
        %1592 = vmatprep.subr.mxu0 0.0
        %1593 = vmatpush1.msra.mxu0 0.0
        %1594 = vmatprep.subr.mxu0 0.0
        %1595 = vmatpush1.msra.mxu0 0.0
        %1596 = vmatprep.subr.mxu0 0.0
        %1597 = vmatpush1.msra.mxu0 0.0
        %1598 = vmatprep.subr.mxu0 0.0
        %1599 = vmatpush1.msra.mxu0 0.0
        %1600 = vmatprep.subr.mxu0 0.0
        %1601 = vmatpush1.msra.mxu0 0.0
        %1602 = vmatprep.subr.mxu0 0.0
        %1603 = vmatpush1.msra.mxu0 0.0
        %1604 = vmatprep.subr.mxu0 0.0
        %1605 = vmatpush1.msra.mxu0 0.0
        %1606 = vmatprep.subr.mxu0 0.0
        %1607 = vmatpush1.msra.mxu0 0.0
        %1608 = vmatprep.subr.mxu0 0.0
        %1609 = vmatpush1.msra.mxu0 0.0
        %1610 = vmatprep.subr.mxu0 0.0
        %1611 = vmatpush1.msra.mxu0 0.0
        %1612 = vmatprep.subr.mxu0 0.0
        %1613 = vmatpush1.msra.mxu0 0.0
        %1614 = vmatprep.subr.mxu0 0.0
        %1615 = vmatpush1.msra.mxu0 0.0
        %1616 = vmatprep.subr.mxu0 0.0
        %1617 = vmatpush1.msra.mxu0 0.0
        %1618 = vmatprep.subr.mxu0 0.0
        %1619 = vmatpush1.msra.mxu0 0.0
        %1620 = vmatprep.subr.mxu0 0.0
        %1621 = vmatpush1.msra.mxu0 0.0
        %1622 = vmatprep.subr.mxu0 0.0
        %1623 = vmatpush1.msra.mxu0 0.0
        %1624 = vmatprep.subr.mxu0 0.0
        %1625 = vmatpush1.msra.mxu0 0.0
        %1626 = vmatprep.subr.mxu0 0.0
        %1627 = vmatpush1.msra.mxu0 0.0
        %1628 = vmatprep.subr.mxu0 0.0
        %1629 = vmatpush1.msra.mxu0 0.0
        %1630 = vmatprep.subr.mxu0 0.0
        %1631 = vmatpush1.msra.mxu0 0.0
        %1632 = vmatprep.subr.mxu0 0.0
        %1633 = vmatpush1.msra.mxu0 0.0
        %1634 = vmatprep.subr.mxu0 0.0
        %1635 = vmatpush1.msra.mxu0 0.0
        %1636 = vmatprep.subr.mxu0 0.0
        %1637 = vmatpush1.msra.mxu0 0.0
        %1638 = vmatprep.subr.mxu0 0.0
        %1639 = vmatpush1.msra.mxu0 0.0
        %1640 = vmatprep.subr.mxu0 0.0
        %1641 = vmatpush1.msra.mxu0 0.0
        %1642 = vmatprep.subr.mxu0 0.0
        %1643 = vmatpush1.msra.mxu0 0.0
        %1644 = vmatprep.mubr.f32.mxu0 0.0
        %1645 = vmatmul.mubr.f32.gmra.mrb[0].mxu0 %v1575
        %v1646 = vpop.f32.mrb[0].mxu0
        %v1647 = vadd.f32 0.0, %v1646
        %v1648 = vpop.f32.mrb[0].mxu0
        %1649 = vdwg.mxu0
        %1651 = vrot.lane.b32.xlu0 %v1410, 8
        %v1652 = vpop.permute.xlu0 %1651
        %1654 = vrot.lane.b32.xlu0 %v1410, 16
        %v1655 = vpop.permute.xlu0 %1654
        %1657 = vrot.lane.b32.xlu0 %v1410, 24
        %v1658 = vpop.permute.xlu0 %1657
        %v1660 = vsel %vm691, %v1410, %v1652
        %vm1661 = vcmask 130048
        %v1662 = vsel %vm1661, %v1660, %v1655
        %vm1663 = vcmask 195584
        %v1664 = vsel %vm1663, %v1662, %v1658
        %1666 = vrot.lane.b32.xlu0 %v743, 64
        %v1667 = vpop.permute.xlu0 %1666
        %v1669 = vmul.f32 %v1647, %v1667
        %1670 = vrot.lane.b32.xlu0 %v934, 48
        %v1671 = vpop.permute.xlu0 %1670
        %v1673 = vmul.f32 %v1647, %v1671
        %1674 = vrot.lane.b32.xlu0 %v1054, 48
        %v1675 = vpop.permute.xlu0 %1674
        %v1677 = vmul.f32 %v1647, %v1675
        %1678 = vrot.lane.b32.xlu0 %v1174, 48
        %v1679 = vpop.permute.xlu0 %1678
        %v1681 = vmul.f32 %v1647, %v1679
        %1683 = vrot.lane.b32.xlu0 %v1664, 96
        %v1684 = vpop.permute.xlu0 %1683
        %v1686 = vmul.f32 %v1647, %v1684
        %1687 = vrot.lane.b32.xlu0 %v1572, 124
        %v1688 = vpop.permute.xlu0 %1687
        %v1689 = vsel %vm1510, %v1688, 0
        %1691 = vmatprep.subr.mxu0 0.0
        %1692 = vmatpush1.msra.mxu0 %v1578
        %1693 = vmatprep.subr.mxu0 0.0
        %1694 = vmatpush1.msra.mxu0 0.0
        %1695 = vmatprep.subr.mxu0 0.0
        %1696 = vmatpush1.msra.mxu0 0.0
        %1697 = vmatprep.subr.mxu0 0.0
        %1698 = vmatpush1.msra.mxu0 0.0
        %1699 = vmatprep.subr.mxu0 0.0
        %1700 = vmatpush1.msra.mxu0 0.0
        %1701 = vmatprep.subr.mxu0 0.0
        %1702 = vmatpush1.msra.mxu0 0.0
        %1703 = vmatprep.subr.mxu0 0.0
        %1704 = vmatpush1.msra.mxu0 0.0
        %1705 = vmatprep.subr.mxu0 0.0
        %1706 = vmatpush1.msra.mxu0 0.0
        %1707 = vmatprep.subr.mxu0 0.0
        %1708 = vmatpush1.msra.mxu0 0.0
        %1709 = vmatprep.subr.mxu0 0.0
        %1710 = vmatpush1.msra.mxu0 0.0
        %1711 = vmatprep.subr.mxu0 0.0
        %1712 = vmatpush1.msra.mxu0 0.0
        %1713 = vmatprep.subr.mxu0 0.0
        %1714 = vmatpush1.msra.mxu0 0.0
        %1715 = vmatprep.subr.mxu0 0.0
        %1716 = vmatpush1.msra.mxu0 0.0
        %1717 = vmatprep.subr.mxu0 0.0
        %1718 = vmatpush1.msra.mxu0 0.0
        %1719 = vmatprep.subr.mxu0 0.0
        %1720 = vmatpush1.msra.mxu0 0.0
        %1721 = vmatprep.subr.mxu0 0.0
        %1722 = vmatpush1.msra.mxu0 0.0
        %1723 = vmatprep.subr.mxu0 0.0
        %1724 = vmatpush1.msra.mxu0 0.0
        %1725 = vmatprep.subr.mxu0 0.0
        %1726 = vmatpush1.msra.mxu0 0.0
        %1727 = vmatprep.subr.mxu0 0.0
        %1728 = vmatpush1.msra.mxu0 0.0
        %1729 = vmatprep.subr.mxu0 0.0
        %1730 = vmatpush1.msra.mxu0 0.0
        %1731 = vmatprep.subr.mxu0 0.0
        %1732 = vmatpush1.msra.mxu0 0.0
        %1733 = vmatprep.subr.mxu0 0.0
        %1734 = vmatpush1.msra.mxu0 0.0
        %1735 = vmatprep.subr.mxu0 0.0
        %1736 = vmatpush1.msra.mxu0 0.0
        %1737 = vmatprep.subr.mxu0 0.0
        %1738 = vmatpush1.msra.mxu0 0.0
        %1739 = vmatprep.subr.mxu0 0.0
        %1740 = vmatpush1.msra.mxu0 0.0
        %1741 = vmatprep.subr.mxu0 0.0
        %1742 = vmatpush1.msra.mxu0 0.0
        %1743 = vmatprep.subr.mxu0 0.0
        %1744 = vmatpush1.msra.mxu0 0.0
        %1745 = vmatprep.subr.mxu0 0.0
        %1746 = vmatpush1.msra.mxu0 0.0
        %1747 = vmatprep.subr.mxu0 0.0
        %1748 = vmatpush1.msra.mxu0 0.0
        %1749 = vmatprep.subr.mxu0 0.0
        %1750 = vmatpush1.msra.mxu0 0.0
        %1751 = vmatprep.subr.mxu0 0.0
        %1752 = vmatpush1.msra.mxu0 0.0
        %1753 = vmatprep.subr.mxu0 0.0
        %1754 = vmatpush1.msra.mxu0 0.0
        %1755 = vmatprep.mubr.f32.mxu0 0.0
        %1756 = vmatmul.mubr.f32.gmra.mrb[0].mxu0 %v1689
        %v1757 = vpop.f32.mrb[0].mxu0
        %v1758 = vadd.f32 0.0, %v1757
        %v1759 = vpop.f32.mrb[0].mxu0
        %1760 = vdwg.mxu0
        %1761 = vrot.lane.b32.xlu0 %v1410, 120
        %v1762 = vpop.permute.xlu0 %1761
        %v1764 = vsel %vm691, %v1762, %v1410
        %v1765 = vsel %vm1661, %v1764, %v1652
        %v1766 = vsel %vm1663, %v1765, %v1655
        %1768 = vrot.lane.b32.xlu0 %v747, 64
        %v1769 = vpop.permute.xlu0 %1768
        %v1771 = vmul.f32 %v1758, %v1769
        %1772 = vrot.lane.b32.xlu0 %v935, 48
        %v1773 = vpop.permute.xlu0 %1772
        %v1775 = vmul.f32 %v1758, %v1773
        %1776 = vrot.lane.b32.xlu0 %v1055, 48
        %v1777 = vpop.permute.xlu0 %1776
        %v1779 = vmul.f32 %v1758, %v1777
        %1780 = vrot.lane.b32.xlu0 %v1175, 48
        %v1781 = vpop.permute.xlu0 %1780
        %v1783 = vmul.f32 %v1758, %v1781
        %1785 = vrot.lane.b32.xlu0 %v1766, 96
        %v1786 = vpop.permute.xlu0 %1785
        %v1788 = vmul.f32 %v1758, %v1786
        %v1789 = vadd.f32 %v1669, %v1771
        %v1790 = vadd.f32 %v1673, %v1775
        %v1791 = vadd.f32 %v1677, %v1779
        %v1792 = vadd.f32 %v1681, %v1783
        %v1793 = vadd.f32 %v1686, %v1788
        %1794 = vrot.lane.b32.xlu0 %v1572, 120
        %v1795 = vpop.permute.xlu0 %1794
        %v1796 = vsel %vm1510, %v1795, 0
        %1798 = vmatprep.subr.mxu0 0.0
        %1799 = vmatpush1.msra.mxu0 %v1578
        %1800 = vmatprep.subr.mxu0 0.0
        %1801 = vmatpush1.msra.mxu0 0.0
        %1802 = vmatprep.subr.mxu0 0.0
        %1803 = vmatpush1.msra.mxu0 0.0
        %1804 = vmatprep.subr.mxu0 0.0
        %1805 = vmatpush1.msra.mxu0 0.0
        %1806 = vmatprep.subr.mxu0 0.0
        %1807 = vmatpush1.msra.mxu0 0.0
        %1808 = vmatprep.subr.mxu0 0.0
        %1809 = vmatpush1.msra.mxu0 0.0
        %1810 = vmatprep.subr.mxu0 0.0
        %1811 = vmatpush1.msra.mxu0 0.0
        %1812 = vmatprep.subr.mxu0 0.0
        %1813 = vmatpush1.msra.mxu0 0.0
        %1814 = vmatprep.subr.mxu0 0.0
        %1815 = vmatpush1.msra.mxu0 0.0
        %1816 = vmatprep.subr.mxu0 0.0
        %1817 = vmatpush1.msra.mxu0 0.0
        %1818 = vmatprep.subr.mxu0 0.0
        %1819 = vmatpush1.msra.mxu0 0.0
        %1820 = vmatprep.subr.mxu0 0.0
        %1821 = vmatpush1.msra.mxu0 0.0
        %1822 = vmatprep.subr.mxu0 0.0
        %1823 = vmatpush1.msra.mxu0 0.0
        %1824 = vmatprep.subr.mxu0 0.0
        %1825 = vmatpush1.msra.mxu0 0.0
        %1826 = vmatprep.subr.mxu0 0.0
        %1827 = vmatpush1.msra.mxu0 0.0
        %1828 = vmatprep.subr.mxu0 0.0
        %1829 = vmatpush1.msra.mxu0 0.0
        %1830 = vmatprep.subr.mxu0 0.0
        %1831 = vmatpush1.msra.mxu0 0.0
        %1832 = vmatprep.subr.mxu0 0.0
        %1833 = vmatpush1.msra.mxu0 0.0
        %1834 = vmatprep.subr.mxu0 0.0
        %1835 = vmatpush1.msra.mxu0 0.0
        %1836 = vmatprep.subr.mxu0 0.0
        %1837 = vmatpush1.msra.mxu0 0.0
        %1838 = vmatprep.subr.mxu0 0.0
        %1839 = vmatpush1.msra.mxu0 0.0
        %1840 = vmatprep.subr.mxu0 0.0
        %1841 = vmatpush1.msra.mxu0 0.0
        %1842 = vmatprep.subr.mxu0 0.0
        %1843 = vmatpush1.msra.mxu0 0.0
        %1844 = vmatprep.subr.mxu0 0.0
        %1845 = vmatpush1.msra.mxu0 0.0
        %1846 = vmatprep.subr.mxu0 0.0
        %1847 = vmatpush1.msra.mxu0 0.0
        %1848 = vmatprep.subr.mxu0 0.0
        %1849 = vmatpush1.msra.mxu0 0.0
        %1850 = vmatprep.subr.mxu0 0.0
        %1851 = vmatpush1.msra.mxu0 0.0
        %1852 = vmatprep.subr.mxu0 0.0
        %1853 = vmatpush1.msra.mxu0 0.0
        %1854 = vmatprep.subr.mxu0 0.0
        %1855 = vmatpush1.msra.mxu0 0.0
        %1856 = vmatprep.subr.mxu0 0.0
        %1857 = vmatpush1.msra.mxu0 0.0
        %1858 = vmatprep.subr.mxu0 0.0
        %1859 = vmatpush1.msra.mxu0 0.0
        %1860 = vmatprep.subr.mxu0 0.0
        %1861 = vmatpush1.msra.mxu0 0.0
        %1862 = vmatprep.mubr.f32.mxu0 0.0
        %1863 = vmatmul.mubr.f32.gmra.mrb[0].mxu0 %v1796
        %v1864 = vpop.f32.mrb[0].mxu0
        %v1865 = vadd.f32 0.0, %v1864
        %v1866 = vpop.f32.mrb[0].mxu0
        %1867 = vdwg.mxu0
        %1868 = vrot.lane.b32.xlu0 %v1410, 112
        %v1869 = vpop.permute.xlu0 %1868
        %v1871 = vsel %vm691, %v1869, %v1762
        %v1872 = vsel %vm1661, %v1871, %v1410
        %v1873 = vsel %vm1663, %v1872, %v1652
        %1875 = vrot.lane.b32.xlu0 %v753, 64
        %v1876 = vpop.permute.xlu0 %1875
        %v1878 = vmul.f32 %v1865, %v1876
        %1879 = vrot.lane.b32.xlu0 %v936, 48
        %v1880 = vpop.permute.xlu0 %1879
        %v1882 = vmul.f32 %v1865, %v1880
        %1883 = vrot.lane.b32.xlu0 %v1056, 48
        %v1884 = vpop.permute.xlu0 %1883
        %v1886 = vmul.f32 %v1865, %v1884
        %1887 = vrot.lane.b32.xlu0 %v1176, 48
        %v1888 = vpop.permute.xlu0 %1887
        %v1890 = vmul.f32 %v1865, %v1888
        %1892 = vrot.lane.b32.xlu0 %v1873, 96
        %v1893 = vpop.permute.xlu0 %1892
        %v1895 = vmul.f32 %v1865, %v1893
        %v1896 = vadd.f32 %v1789, %v1878
        %v1897 = vadd.f32 %v1790, %v1882
        %v1898 = vadd.f32 %v1791, %v1886
        %v1899 = vadd.f32 %v1792, %v1890
        %v1900 = vadd.f32 %v1793, %v1895
        %1901 = vrot.lane.b32.xlu0 %v1572, 116
        %v1902 = vpop.permute.xlu0 %1901
        %v1903 = vsel %vm1510, %v1902, 0
        %1905 = vmatprep.subr.mxu0 0.0
        %1906 = vmatpush1.msra.mxu0 %v1578
        %1907 = vmatprep.subr.mxu0 0.0
        %1908 = vmatpush1.msra.mxu0 0.0
        %1909 = vmatprep.subr.mxu0 0.0
        %1910 = vmatpush1.msra.mxu0 0.0
        %1911 = vmatprep.subr.mxu0 0.0
        %1912 = vmatpush1.msra.mxu0 0.0
        %1913 = vmatprep.subr.mxu0 0.0
        %1914 = vmatpush1.msra.mxu0 0.0
        %1915 = vmatprep.subr.mxu0 0.0
        %1916 = vmatpush1.msra.mxu0 0.0
        %1917 = vmatprep.subr.mxu0 0.0
        %1918 = vmatpush1.msra.mxu0 0.0
        %1919 = vmatprep.subr.mxu0 0.0
        %1920 = vmatpush1.msra.mxu0 0.0
        %1921 = vmatprep.subr.mxu0 0.0
        %1922 = vmatpush1.msra.mxu0 0.0
        %1923 = vmatprep.subr.mxu0 0.0
        %1924 = vmatpush1.msra.mxu0 0.0
        %1925 = vmatprep.subr.mxu0 0.0
        %1926 = vmatpush1.msra.mxu0 0.0
        %1927 = vmatprep.subr.mxu0 0.0
        %1928 = vmatpush1.msra.mxu0 0.0
        %1929 = vmatprep.subr.mxu0 0.0
        %1930 = vmatpush1.msra.mxu0 0.0
        %1931 = vmatprep.subr.mxu0 0.0
        %1932 = vmatpush1.msra.mxu0 0.0
        %1933 = vmatprep.subr.mxu0 0.0
        %1934 = vmatpush1.msra.mxu0 0.0
        %1935 = vmatprep.subr.mxu0 0.0
        %1936 = vmatpush1.msra.mxu0 0.0
        %1937 = vmatprep.subr.mxu0 0.0
        %1938 = vmatpush1.msra.mxu0 0.0
        %1939 = vmatprep.subr.mxu0 0.0
        %1940 = vmatpush1.msra.mxu0 0.0
        %1941 = vmatprep.subr.mxu0 0.0
        %1942 = vmatpush1.msra.mxu0 0.0
        %1943 = vmatprep.subr.mxu0 0.0
        %1944 = vmatpush1.msra.mxu0 0.0
        %1945 = vmatprep.subr.mxu0 0.0
        %1946 = vmatpush1.msra.mxu0 0.0
        %1947 = vmatprep.subr.mxu0 0.0
        %1948 = vmatpush1.msra.mxu0 0.0
        %1949 = vmatprep.subr.mxu0 0.0
        %1950 = vmatpush1.msra.mxu0 0.0
        %1951 = vmatprep.subr.mxu0 0.0
        %1952 = vmatpush1.msra.mxu0 0.0
        %1953 = vmatprep.subr.mxu0 0.0
        %1954 = vmatpush1.msra.mxu0 0.0
        %1955 = vmatprep.subr.mxu0 0.0
        %1956 = vmatpush1.msra.mxu0 0.0
        %1957 = vmatprep.subr.mxu0 0.0
        %1958 = vmatpush1.msra.mxu0 0.0
        %1959 = vmatprep.subr.mxu0 0.0
        %1960 = vmatpush1.msra.mxu0 0.0
        %1961 = vmatprep.subr.mxu0 0.0
        %1962 = vmatpush1.msra.mxu0 0.0
        %1963 = vmatprep.subr.mxu0 0.0
        %1964 = vmatpush1.msra.mxu0 0.0
        %1965 = vmatprep.subr.mxu0 0.0
        %1966 = vmatpush1.msra.mxu0 0.0
        %1967 = vmatprep.subr.mxu0 0.0
        %1968 = vmatpush1.msra.mxu0 0.0
        %1969 = vmatprep.mubr.f32.mxu0 0.0
        %1970 = vmatmul.mubr.f32.gmra.mrb[0].mxu0 %v1903
        %v1971 = vpop.f32.mrb[0].mxu0
        %v1972 = vadd.f32 0.0, %v1971
        %v1973 = vpop.f32.mrb[0].mxu0
        %1974 = vdwg.mxu0
        %1975 = vrot.lane.b32.xlu0 %v1410, 104
        %v1976 = vpop.permute.xlu0 %1975
        %v1978 = vsel %vm691, %v1976, %v1869
        %v1979 = vsel %vm1661, %v1978, %v1762
        %v1980 = vsel %vm1663, %v1979, %v1410
        %1982 = vrot.lane.b32.xlu0 %v757, 64
        %v1983 = vpop.permute.xlu0 %1982
        %v1985 = vmul.f32 %v1972, %v1983
        %1986 = vrot.lane.b32.xlu0 %v937, 48
        %v1987 = vpop.permute.xlu0 %1986
        %v1989 = vmul.f32 %v1972, %v1987
        %1990 = vrot.lane.b32.xlu0 %v1057, 48
        %v1991 = vpop.permute.xlu0 %1990
        %v1993 = vmul.f32 %v1972, %v1991
        %1994 = vrot.lane.b32.xlu0 %v1177, 48
        %v1995 = vpop.permute.xlu0 %1994
        %v1997 = vmul.f32 %v1972, %v1995
        %1999 = vrot.lane.b32.xlu0 %v1980, 96
        %v2000 = vpop.permute.xlu0 %1999
        %v2002 = vmul.f32 %v1972, %v2000
        %v2003 = vadd.f32 %v1896, %v1985
        %v2004 = vadd.f32 %v1897, %v1989
        %v2005 = vadd.f32 %v1898, %v1993
        %v2006 = vadd.f32 %v1899, %v1997
        %v2007 = vadd.f32 %v1900, %v2002
        %v2008 = vmul.f32 %v2004, %v2004
        %v2009 = vmul.f32 %v2005, %v2005
        %v2010 = vadd.f32 %v2008, %v2009
        %v2011 = vmul.f32 %v2006, %v2006
        %v2012 = vadd.f32 %v2010, %v2011
        %v2013 = vadd.f32 %v2012, 1e-06
        %v2014 = vrsqrt.pop %v2013
        %v2015 = vmul.f32 %v2013, %v2014
        %vm2016 = vcmp.eq.f32.partialorder %v2013, inf
        %v2017 = vsel %vm2016, %v2013, %v2015
        %vm2018 = vcmp.eq.f32.partialorder %v2013, 0.0
        %v2019 = vand.u32 %v2013, 2147483648
        %v2020 = vsel %vm2018, %v2019, %v2017
        %2022 = vrot.lane.b32.xlu0 %v2005, 32
        %v2023 = vpop.permute.xlu0 %2022
        %2026 = vrot.lane.b32.xlu0 %v2006, 64
        %v2027 = vpop.permute.xlu0 %2026
        %2030 = vrot.lane.b32.xlu0 %v2020, 96
        %v2031 = vpop.permute.xlu0 %2030
        %2034 = vrot.lane.b32.xlu0 %v2007, 96
        %v2035 = vpop.permute.xlu0 %2034
        %v2037 = vsel %vm1294, %v2003, %v2004
        %vm2038 = vcmask 785408
        %v2039 = vsel %vm2038, %v2037, %v2023
        %v2040 = vsel %vm572, %v2027, %v2031
        %v2041 = vsel %vm1294, %v2040, %v2035
        %v2042 = vld [vmem:[%s10] sm:$0xff]
        %v2043 = vld [vmem:[%s10 + $0x8] sm:$0xff]
        %v2044 = vld [vmem:[%s10 + $0x10] sm:$0xff]
        %v2045 = vld [vmem:[%s10 + $0x18] sm:$0xff]
        %v2046 = vld [vmem:[%s10 + $0x20] sm:$0xff]
        %v2047 = vld [vmem:[%s10 + $0x28] sm:$0xff]
        %v2048 = vld [vmem:[%s10 + $0x30] sm:$0xff]
        %v2049 = vld [vmem:[%s10 + $0x38] sm:$0xff]
        %v2050 = vld [vmem:[%s10 + $0x40] sm:$0xff]
        %v2051 = vld [vmem:[%s10 + $0x48] sm:$0xff]
        %v2052 = vld [vmem:[%s10 + $0x50] sm:$0xff]
        %v2053 = vld [vmem:[%s10 + $0x58] sm:$0xff]
        %v2054 = vld [vmem:[%s10 + $0x60] sm:$0xff]
        %v2055 = vld [vmem:[%s10 + $0x68] sm:$0xff]
        %v2056 = vld [vmem:[%s10 + $0x70] sm:$0xff]
        %v2057 = vld [vmem:[%s10 + $0x78] sm:$0xff]
        %v2058 = vld [vmem:[%s10 + $0x80] sm:$0xff]
        %v2059 = vld [vmem:[%s10 + $0x88] sm:$0xff]
        %v2060 = vld [vmem:[%s10 + $0x90] sm:$0xff]
        %v2061 = vld [vmem:[%s10 + $0x98] sm:$0xff]
        %v2062 = vld [vmem:[%s10 + $0xa0] sm:$0xff]
        %v2063 = vld [vmem:[%s10 + $0xa8] sm:$0xff]
        %v2064 = vld [vmem:[%s10 + $0xb0] sm:$0xff]
        %v2065 = vld [vmem:[%s10 + $0xb8] sm:$0xff]
        %v2066 = vld [vmem:[%s10 + $0xc0] sm:$0xff]
        %v2067 = vld [vmem:[%s10 + $0xc8] sm:$0xff]
        %v2068 = vld [vmem:[%s10 + $0xd0] sm:$0xff]
        %v2069 = vld [vmem:[%s10 + $0xd8] sm:$0xff]
        %v2070 = vld [vmem:[%s11] sm:$0x1]
        %v2072 = vlaneseq
        %v2073 = vshrl.u32 %v2072, 7
        %v2074 = vsub.s32 0, %v2073
        %v2075 = vrot.slane %v2070, %v2074
        %v2078 = vsel %vm2038, %v2041, 0
        %2080 = vmatprep.subr.mxu0 0.0
        %2081 = vmatpush1.msra.mxu0 %v2042
        %2082 = vmatprep.subr.mxu0 0.0
        %2083 = vmatpush1.msra.mxu0 %v2043
        %2084 = vmatprep.subr.mxu0 0.0
        %2085 = vmatpush1.msra.mxu0 %v2044
        %2086 = vmatprep.subr.mxu0 0.0
        %2087 = vmatpush1.msra.mxu0 %v2045
        %2088 = vmatprep.subr.mxu0 0.0
        %2089 = vmatpush1.msra.mxu0 %v2046
        %2090 = vmatprep.subr.mxu0 0.0
        %2091 = vmatpush1.msra.mxu0 %v2047
        %2092 = vmatprep.subr.mxu0 0.0
        %2093 = vmatpush1.msra.mxu0 %v2048
        %2094 = vmatprep.subr.mxu0 0.0
        %2095 = vmatpush1.msra.mxu0 %v2049
        %2096 = vmatprep.subr.mxu0 0.0
        %2097 = vmatpush1.msra.mxu0 %v2050
        %2098 = vmatprep.subr.mxu0 0.0
        %2099 = vmatpush1.msra.mxu0 %v2051
        %2100 = vmatprep.subr.mxu0 0.0
        %2101 = vmatpush1.msra.mxu0 %v2052
        %2102 = vmatprep.subr.mxu0 0.0
        %2103 = vmatpush1.msra.mxu0 %v2053
        %2104 = vmatprep.subr.mxu0 0.0
        %2105 = vmatpush1.msra.mxu0 %v2054
        %2106 = vmatprep.subr.mxu0 0.0
        %2107 = vmatpush1.msra.mxu0 %v2055
        %2108 = vmatprep.subr.mxu0 0.0
        %2109 = vmatpush1.msra.mxu0 %v2056
        %2110 = vmatprep.subr.mxu0 0.0
        %2111 = vmatpush1.msra.mxu0 %v2057
        %2112 = vmatprep.subr.mxu0 0.0
        %2113 = vmatpush1.msra.mxu0 %v2058
        %2114 = vmatprep.subr.mxu0 0.0
        %2115 = vmatpush1.msra.mxu0 %v2059
        %2116 = vmatprep.subr.mxu0 0.0
        %2117 = vmatpush1.msra.mxu0 %v2060
        %2118 = vmatprep.subr.mxu0 0.0
        %2119 = vmatpush1.msra.mxu0 %v2061
        %2120 = vmatprep.subr.mxu0 0.0
        %2121 = vmatpush1.msra.mxu0 %v2062
        %2122 = vmatprep.subr.mxu0 0.0
        %2123 = vmatpush1.msra.mxu0 %v2063
        %2124 = vmatprep.subr.mxu0 0.0
        %2125 = vmatpush1.msra.mxu0 %v2064
        %2126 = vmatprep.subr.mxu0 0.0
        %2127 = vmatpush1.msra.mxu0 %v2065
        %2128 = vmatprep.subr.mxu0 0.0
        %2129 = vmatpush1.msra.mxu0 %v2066
        %2130 = vmatprep.subr.mxu0 0.0
        %2131 = vmatpush1.msra.mxu0 %v2067
        %2132 = vmatprep.subr.mxu0 0.0
        %2133 = vmatpush1.msra.mxu0 %v2068
        %2134 = vmatprep.subr.mxu0 0.0
        %2135 = vmatpush1.msra.mxu0 %v2069
        %2136 = vmatprep.subr.mxu0 0.0
        %2137 = vmatpush1.msra.mxu0 0.0
        %2138 = vmatprep.subr.mxu0 0.0
        %2139 = vmatpush1.msra.mxu0 0.0
        %2140 = vmatprep.subr.mxu0 0.0
        %2141 = vmatpush1.msra.mxu0 0.0
        %2142 = vmatprep.subr.mxu0 0.0
        %2143 = vmatpush1.msra.mxu0 0.0
        %2144 = vmatprep.mubr.f32.mxu0 %v2078
        %2145 = vmatmul.mubr.f32.gmra.mrb[0].mxu0 %v2039
        %v2146 = vpop.f32.mrb[0].mxu0
        %v2147 = vadd.f32 %v2075, %v2146
        %v2148 = vpop.f32.mrb[0].mxu0
        %2149 = vdwg.mxu0
        %2150 = vst.msk [vmem:[%s525] sm:$0xff] %vm572, %v2147
        %s2151 = sand.u32 %s340, 1
        %s2152 = scalar_lea.sflag [#allocation3], %s2151
        %s2153 = sand.u32 %s340, 1
        %s2154 = smul.addr %s2153, 8
        %s2155 = scalar_lea.vmem [#allocation2], %s2154
        // Predicated region
        $region69: #{tpu_custom_call.1} parent=67 // pred_check
          %p2156 = pneg %p350
        $region70: #{tpu_custom_call.1} parent=67 // pred_check_branch
          %2158 = sbr.rel (%p2156) target = $region72
        $region71: #{tpu_custom_call.1} parent=67 // pred_region
          %s2160 = ssub.s32 128, 128
          %2161 = vsyncadd %s2152, %s2160
          %s2162 = sadd.s32 %s31, %s30
          %s2163 = smul.addr %s2162, 128
          %s2164 = scalar_lea.hbm %s12, %s2163
          %s2166 = sshll.u32 %s2155, 4
          %s2167 = int_to_ptr.vmem [resolvable:$true] %s2166
          %2169 = dma.vmem_to_hbm [thread:$0]  %s2167, 128, %s2164, %s2152
        $region72: #{tpu_custom_call.1} parent=67 // pred_fallthru
          _
      $region68: #{tpu_custom_call.1} parent=5 // pred_fallthru
        _
      %p2170 = scmp.le.s32.totalorder 2, %s21
      // Predicated region
      $region73: #{tpu_custom_call.1} parent=5 // pred_check
        %p2171 = pneg %p2170
      $region74: #{tpu_custom_call.1} parent=5 // pred_check_branch
        %2173 = sbr.rel (%p2171) target = $region76
      $region75: #{tpu_custom_call.1} parent=5 // pred_region
        %s2174 = ssub.s32 %s21, 2
        // Predicated region
        $region77: #{tpu_custom_call.1} parent=75 // pred_check
          %p2175 = pneg %p356
        $region78: #{tpu_custom_call.1} parent=75 // pred_check_branch
          %2177 = sbr.rel (%p2175) target = $region80
        $region79: #{tpu_custom_call.1} parent=75 // pred_region
          %s2178 = sand.u32 %s341, 1
          %s2179 = scalar_lea.sflag [#allocation3], %s2178
          %s2180 = sand.u32 %s341, 1
          %s2181 = smul.addr %s2180, 8
          %s2182 = scalar_lea.vmem [#allocation2], %s2181
          %2183 = dma.done %s2179, 128
        $region80: #{tpu_custom_call.1} parent=75 // pred_fallthru
          _
      $region76: #{tpu_custom_call.1} parent=5 // pred_fallthru
        _
    $region6: #{tpu_custom_call.1} parent=1 // loop_footer
      %s25 = sadd.s32 1, %s21
    $region7: #{tpu_custom_call.1} parent=1 // loop_footer_branch
      %20 = sbr.rel target = $region3
    $region8: #{tpu_custom_call.1} parent=1 // loop_exit
      _
    %2184 = vsyncpa [#allocation3], 1
    %s2185 = scalar_lea.sflag [#allocation3], 1
    %2186 = vsyncpa %s2185, 1

</llo_original>
